<compile_context>
chip_gen: v7x
topology: tpu7x:2x2x1
jax: 0.10.0
libtpu: 0.0.40
codegen_flags: <defaults>
</compile_context>

<pallas_src>
import math

import jax
import jax.numpy as jnp
from jax.experimental import pallas as pl
from jax.experimental.pallas import tpu as pltpu


def _down_conv3x3_kernel(top_ref, mid_ref, bot_ref, w_ref, o_ref):
    """Reflect-padded 3x3 conv on one (1, TH, W, Cin) tile.

    top_ref: (1, 1,  W, Cin)  halo row above the tile (already mirror-reflected at the border)
    mid_ref: (1, TH, W, Cin)  main tile rows
    bot_ref: (1, 1,  W, Cin)  halo row below the tile (already mirror-reflected at the border)
    w_ref  : (9*Cin, Cout)    weight, tap-major layout (kh*3 + kw)*Cin + cin
    o_ref  : (1, TH, W, Cout) conv output tile (PixelUnshuffle handled outside)
    """
    _, TH, W, Cin = mid_ref.shape

    # Stitch row halos: (TH + 2, W, Cin)
    x = jnp.concatenate([top_ref[0], mid_ref[0], bot_ref[0]], axis=0)
    # Reflect-pad along W in-kernel: col -1 -> col 1, col W -> col W-2.  (TH+2, W+2, Cin)
    x = jnp.concatenate([x[:, 1:2, :], x, x[:, W - 2:W - 1, :]], axis=1)

    # im2col: 9 shifted views stacked on the channel (lane) axis -> one big-K matmul.
    slab = jnp.concatenate(
        [x[kh:kh + TH, kw:kw + W, :] for kh in range(3) for kw in range(3)],
        axis=-1)                                           # (TH, W, 9*Cin)

    y = jnp.einsum("hwk,kc->hwc", slab, w_ref[...],
                   preferred_element_type=jnp.float32)     # (TH, W, Cout), f32 accum
    o_ref[0] = y.astype(o_ref.dtype)


def _pick_tile_h(H, W, Cin, Cout, itemsize, budget_bytes=6 * 1024 * 1024):
    """Largest even divisor of H whose per-tile VMEM footprint fits the budget."""
    acc_bytes = max(int(itemsize), 4)
    # ~ double-buffered in/out blocks + padded copy + 9*Cin im2col slab + f32 result.
    row_bytes = W * ((3 + 10) * Cin + 3 * Cout) * acc_bytes
    cap = max(2, budget_bytes // max(row_bytes, 1))
    th = 2
    for cand in range(2, H + 1, 2):
        if H % cand == 0 and cand <= cap:
            th = cand
    return th


def downsample_pallas(x_nchw, wmat, *, tile_h=None, compute_dtype=None,
                      vmem_limit_bytes=32 * 1024 * 1024):
    """x_nchw: (B, Cin, H, W); wmat: (9*Cin, Cout).  Returns (B, 4*Cout, H//2, W//2)."""
    B, Cin, H, W = x_nchw.shape
    k2cin, Cout = wmat.shape
    assert k2cin == 9 * Cin, (k2cin, Cin)
    assert H % 2 == 0 and W % 2 == 0, "PixelUnshuffle(2) needs even H, W"
    assert H >= 2 and W >= 2, "reflect padding needs H, W >= 2"

    out_dtype = x_nchw.dtype
    x = jnp.transpose(x_nchw, (0, 2, 3, 1))                 # NHWC
    if compute_dtype is not None:
        x = x.astype(compute_dtype)
        wmat = wmat.astype(compute_dtype)
    else:
        wmat = wmat.astype(x.dtype)

    itemsize = jnp.dtype(x.dtype).itemsize
    TH = tile_h if tile_h is not None else _pick_tile_h(H, W, Cin, Cout, itemsize)
    assert H % TH == 0 and TH >= 2, (H, TH)
    n_h = H // TH

    # Halo-row index maps implement the mirror reflection arithmetically:
    #   top row    = |h*TH - 1|                (row -1 reflects to row 1)
    #   bottom row = (H-1) - |(H-1) - (h+1)TH| (row H reflects to row H-2)
    top_map = lambda b, h: (b, jnp.abs(h * TH - 1), 0, 0)
    mid_map = lambda b, h: (b, h, 0, 0)
    bot_map = lambda b, h: (b, (H - 1) - jnp.abs((H - 1) - (h * TH + TH)), 0, 0)

    y = pl.pallas_call(
        _down_conv3x3_kernel,
        out_shape=jax.ShapeDtypeStruct((B, H, W, Cout), out_dtype),
        grid_spec=pltpu.PrefetchScalarGridSpec(
            num_scalar_prefetch=0,
            grid=(B, n_h),
            in_specs=[
                pl.BlockSpec((1, 1, W, Cin), top_map),
                pl.BlockSpec((1, TH, W, Cin), mid_map),
                pl.BlockSpec((1, 1, W, Cin), bot_map),
                pl.BlockSpec((9 * Cin, Cout), lambda b, h: (0, 0)),   # weight stays resident
            ],
            out_specs=pl.BlockSpec((1, TH, W, Cout), lambda b, h: (b, h, 0, 0)),
        ),
        compiler_params=pltpu.CompilerParams(
            dimension_semantics=("parallel", "parallel"),
            vmem_limit_bytes=vmem_limit_bytes,
        ),
    )(x, x, x, wmat)

    # Fused PixelUnshuffle(2) + NHWC->NCHW: one transpose pass.
    # out[b, c*4 + i*2 + j, ho, wo] = y[b, 2*ho+i, 2*wo+j, c]  (matches torch.PixelUnshuffle)
    Ho, Wo = H // 2, W // 2
    y = y.reshape(B, Ho, 2, Wo, 2, Cout)
    y = jnp.transpose(y, (0, 5, 2, 4, 1, 3))                # (B, Cout, 2, 2, Ho, Wo)
    return y.reshape(B, 4 * Cout, Ho, Wo)


class DownsamplePallas:
    """Equivalent of Downsample: Conv2d(n_feat -> n_feat//2, 3, reflect, no bias) + PixelUnshuffle(2)."""

    def __init__(self, n_feat, kernel_size=3, key=None, compute_dtype=None):
        assert kernel_size == 3, "only kernel_size=3 supported"  # TODO(synk): general odd k
        if key is None:
            key = jax.random.PRNGKey(0)
        cin, cout = n_feat, n_feat // 2
        fan_in = cin * kernel_size * kernel_size
        bound = 1.0 / math.sqrt(fan_in)     # ~ PyTorch kaiming_uniform(a=sqrt(5)) default
        # Stored as (KH, KW, Cin, Cout); kernel consumes the (9*Cin, Cout) matmul layout.
        self.weight = jax.random.uniform(
            key, (kernel_size, kernel_size, cin, cout),
            dtype=jnp.float32, minval=-bound, maxval=bound)
        self.wmat = self.weight.reshape(kernel_size * kernel_size * cin, cout)
        self.compute_dtype = compute_dtype

    def __call__(self, x_nchw):
        # (B, n_feat, H, W) -> (B, 2*n_feat, H//2, W//2)
        return downsample_pallas(x_nchw, self.wmat, compute_dtype=self.compute_dtype)


def downsample_reference(x_nchw, weight_khwc):
    """Plain-JAX reference: reflect-pad conv3x3 (per-tap) + PixelUnshuffle(2), NCHW."""
    B, Cin, H, W = x_nchw.shape
    KH, KW, _, Cout = weight_khwc.shape
    x = jnp.transpose(x_nchw, (0, 2, 3, 1))
    xp = jnp.pad(x, ((0, 0), (1, 1), (1, 1), (0, 0)), mode="reflect")
    y = jnp.zeros((B, H, W, Cout), jnp.float32)
    for kh in range(KH):
        for kw in range(KW):
            y = y + jnp.einsum("bhwc,co->bhwo", xp[:, kh:kh + H, kw:kw + W, :],
                               weight_khwc[kh, kw], preferred_element_type=jnp.float32)
    y = jnp.transpose(y, (0, 3, 1, 2)).astype(x_nchw.dtype)      # NCHW
    Ho, Wo = H // 2, W // 2
    y = y.reshape(B, Cout, Ho, 2, Wo, 2)
    y = jnp.transpose(y, (0, 1, 3, 5, 2, 4))
    return y.reshape(B, 4 * Cout, Ho, Wo)


if __name__ == "__main__":
    key = jax.random.PRNGKey(0)
    k_x, k_w = jax.random.split(key)

    B, C, H, W = 2, 4, 16, 16
    x = jax.random.normal(k_x, (B, C, H, W), dtype=jnp.float32)

    mod = DownsamplePallas(n_feat=C, kernel_size=3, key=k_w)
    out = jax.block_until_ready(mod(x))

    assert out.shape == (B, 2 * C, H // 2, W // 2), out.shape
    assert out.dtype == x.dtype

    ref = downsample_reference(x, mod.weight)
    max_err = float(jnp.max(jnp.abs(out - ref)))
    assert max_err < 1e-1, f"mismatch vs reference: {max_err}"

    print("KERNEL_OK")
</pallas_src>

<mosaic_0001>
module attributes {stable_mosaic.version = 11 : i64} {
  func.func @_down_conv3x3_kernel(%arg0: i32, %arg1: i32, %arg2: memref<1x1x16x4xf32, #tpu.memory_space<vmem>>, %arg3: memref<1x16x16x4xf32, #tpu.memory_space<vmem>>, %arg4: memref<1x1x16x4xf32, #tpu.memory_space<vmem>>, %arg5: memref<36x2xf32, #tpu.memory_space<vmem>>, %arg6: memref<1x16x16x2xf32, #tpu.memory_space<vmem>>) attributes {dimension_semantics = [#tpu.dimension_semantics<parallel>, #tpu.dimension_semantics<parallel>], iteration_bounds = array<i64: 2, 1>, scalar_prefetch = 0 : i64, scratch_operands = 0 : i64, tpu.core_type = #tpu.core_type<tc>, window_params = [{transform_indices = @transform_0, window_bounds = array<i64: 1, 1, 16, 4>}, {transform_indices = @transform_1, window_bounds = array<i64: 1, 16, 16, 4>}, {transform_indices = @transform_2, window_bounds = array<i64: 1, 1, 16, 4>}, {pipeline_mode = #tpu.pipeline_mode<synchronous>, transform_indices = @transform_3, window_bounds = array<i64: 36, 2>}, {transform_indices = @transform_4, window_bounds = array<i64: 1, 16, 16, 2>}]} {
    %c0 = arith.constant 0 : index
    %c0_0 = arith.constant 0 : index
    %c0_1 = arith.constant 0 : index
    %c0_2 = arith.constant 0 : index
    %0 = vector.load %arg2[%c0, %c0_0, %c0_1, %c0_2] : memref<1x1x16x4xf32, #tpu.memory_space<vmem>>, vector<1x1x16x4xf32>
    %1 = vector.shape_cast %0 : vector<1x1x16x4xf32> to vector<1x16x4xf32>
    %c0_3 = arith.constant 0 : index
    %c0_4 = arith.constant 0 : index
    %c0_5 = arith.constant 0 : index
    %c0_6 = arith.constant 0 : index
    %2 = vector.load %arg3[%c0_3, %c0_4, %c0_5, %c0_6] : memref<1x16x16x4xf32, #tpu.memory_space<vmem>>, vector<1x16x16x4xf32>
    %3 = vector.shape_cast %2 : vector<1x16x16x4xf32> to vector<16x16x4xf32>
    %c0_7 = arith.constant 0 : index
    %c0_8 = arith.constant 0 : index
    %c0_9 = arith.constant 0 : index
    %c0_10 = arith.constant 0 : index
    %4 = vector.load %arg4[%c0_7, %c0_8, %c0_9, %c0_10] : memref<1x1x16x4xf32, #tpu.memory_space<vmem>>, vector<1x1x16x4xf32>
    %5 = vector.shape_cast %4 : vector<1x1x16x4xf32> to vector<1x16x4xf32>
    %6 = tpu.concatenate %1, %3, %5 in 0 : vector<1x16x4xf32>, vector<16x16x4xf32>, vector<1x16x4xf32> -> vector<18x16x4xf32>
    %7 = vector.extract_strided_slice %6 {offsets = [0, 1, 0], sizes = [18, 1, 4], strides = [1, 1, 1]} : vector<18x16x4xf32> to vector<18x1x4xf32>
    %8 = vector.extract_strided_slice %6 {offsets = [0, 14, 0], sizes = [18, 1, 4], strides = [1, 1, 1]} : vector<18x16x4xf32> to vector<18x1x4xf32>
    %9 = tpu.concatenate %7, %6, %8 in 1 : vector<18x1x4xf32>, vector<18x16x4xf32>, vector<18x1x4xf32> -> vector<18x18x4xf32>
    %10 = vector.extract_strided_slice %9 {offsets = [0, 0, 0], sizes = [16, 16, 4], strides = [1, 1, 1]} : vector<18x18x4xf32> to vector<16x16x4xf32>
    %11 = vector.extract_strided_slice %9 {offsets = [0, 1, 0], sizes = [16, 16, 4], strides = [1, 1, 1]} : vector<18x18x4xf32> to vector<16x16x4xf32>
    %12 = vector.extract_strided_slice %9 {offsets = [0, 2, 0], sizes = [16, 16, 4], strides = [1, 1, 1]} : vector<18x18x4xf32> to vector<16x16x4xf32>
    %13 = vector.extract_strided_slice %9 {offsets = [1, 0, 0], sizes = [16, 16, 4], strides = [1, 1, 1]} : vector<18x18x4xf32> to vector<16x16x4xf32>
    %14 = vector.extract_strided_slice %9 {offsets = [1, 1, 0], sizes = [16, 16, 4], strides = [1, 1, 1]} : vector<18x18x4xf32> to vector<16x16x4xf32>
    %15 = vector.extract_strided_slice %9 {offsets = [1, 2, 0], sizes = [16, 16, 4], strides = [1, 1, 1]} : vector<18x18x4xf32> to vector<16x16x4xf32>
    %16 = vector.extract_strided_slice %9 {offsets = [2, 0, 0], sizes = [16, 16, 4], strides = [1, 1, 1]} : vector<18x18x4xf32> to vector<16x16x4xf32>
    %17 = vector.extract_strided_slice %9 {offsets = [2, 1, 0], sizes = [16, 16, 4], strides = [1, 1, 1]} : vector<18x18x4xf32> to vector<16x16x4xf32>
    %18 = vector.extract_strided_slice %9 {offsets = [2, 2, 0], sizes = [16, 16, 4], strides = [1, 1, 1]} : vector<18x18x4xf32> to vector<16x16x4xf32>
    %19 = tpu.concatenate %10, %11, %12, %13, %14, %15, %16, %17, %18 in 2 : vector<16x16x4xf32>, vector<16x16x4xf32>, vector<16x16x4xf32>, vector<16x16x4xf32>, vector<16x16x4xf32>, vector<16x16x4xf32>, vector<16x16x4xf32>, vector<16x16x4xf32>, vector<16x16x4xf32> -> vector<16x16x36xf32>
    %c0_11 = arith.constant 0 : index
    %c0_12 = arith.constant 0 : index
    %20 = vector.load %arg5[%c0_11, %c0_12] : memref<36x2xf32, #tpu.memory_space<vmem>>, vector<36x2xf32>
    "tpu.trace_start"() <{level = 10 : i32, message = "hwk,kc->hwc"}> : () -> ()
    %cst = arith.constant dense<0.000000e+00> : vector<16x16x2xf32>
    %21 = tpu.matmul %19, %20, %cst {dimension_numbers = #tpu.dot_dimension_numbers<[2], [0], [0, 1], [1], [0, 0, 0, 1, 1, 1], [], []>} : vector<16x16x36xf32>, vector<36x2xf32>, vector<16x16x2xf32> -> vector<16x16x2xf32>
    "tpu.trace_stop"() : () -> ()
    %c0_13 = arith.constant 0 : index
    %c0_14 = arith.constant 0 : index
    %c0_15 = arith.constant 0 : index
    %c0_16 = arith.constant 0 : index
    %22 = vector.load %arg6[%c0_13, %c0_14, %c0_15, %c0_16] : memref<1x16x16x2xf32, #tpu.memory_space<vmem>>, vector<1x16x16x2xf32>
    %23 = vector.shape_cast %22 : vector<1x16x16x2xf32> to vector<16x16x2xf32>
    %24 = vector.shape_cast %21 : vector<16x16x2xf32> to vector<1x16x16x2xf32>
    tpu.vector_store %arg6[%c0_13, %c0_14, %c0_15, %c0_16], %24 {strides = array<i32>} : memref<1x16x16x2xf32, #tpu.memory_space<vmem>>, vector<1x16x16x2xf32>,
    return
  }
  func.func @transform_0(%arg0: i32, %arg1: i32) -> (i32, i32, i32, i32) {
    %c16_i32 = arith.constant 16 : i32
    %0 = arith.muli %arg1, %c16_i32 : i32
    %c1_i32 = arith.constant 1 : i32
    %1 = arith.subi %0, %c1_i32 : i32
    %2 = math.absi %1 : i32
    %c0_i32 = arith.constant 0 : i32
    %c0_i32_0 = arith.constant 0 : i32
    %c0_i32_1 = arith.constant 0 : i32
    return %arg0, %2, %c0_i32, %c0_i32_0 : i32, i32, i32, i32
  }
  func.func @transform_1(%arg0: i32, %arg1: i32) -> (i32, i32, i32, i32) {
    %c0_i32 = arith.constant 0 : i32
    %c0_i32_0 = arith.constant 0 : i32
    %c0_i32_1 = arith.constant 0 : i32
    return %arg0, %arg1, %c0_i32, %c0_i32_0 : i32, i32, i32, i32
  }
  func.func @transform_2(%arg0: i32, %arg1: i32) -> (i32, i32, i32, i32) {
    %c16_i32 = arith.constant 16 : i32
    %0 = arith.muli %arg1, %c16_i32 : i32
    %c16_i32_0 = arith.constant 16 : i32
    %1 = arith.addi %0, %c16_i32_0 : i32
    %c15_i32 = arith.constant 15 : i32
    %2 = arith.subi %c15_i32, %1 : i32
    %3 = math.absi %2 : i32
    %c15_i32_1 = arith.constant 15 : i32
    %4 = arith.subi %c15_i32_1, %3 : i32
    %c0_i32 = arith.constant 0 : i32
    %c0_i32_2 = arith.constant 0 : i32
    %c0_i32_3 = arith.constant 0 : i32
    return %arg0, %4, %c0_i32, %c0_i32_2 : i32, i32, i32, i32
  }
  func.func @transform_3(%arg0: i32, %arg1: i32) -> (i32, i32) {
    %c0_i32 = arith.constant 0 : i32
    %c0_i32_0 = arith.constant 0 : i32
    %c0_i32_1 = arith.constant 0 : i32
    return %c0_i32, %c0_i32_0 : i32, i32
  }
  func.func @transform_4(%arg0: i32, %arg1: i32) -> (i32, i32, i32, i32) {
    %c0_i32 = arith.constant 0 : i32
    %c0_i32_0 = arith.constant 0 : i32
    %c0_i32_1 = arith.constant 0 : i32
    return %arg0, %arg1, %c0_i32, %c0_i32_0 : i32, i32, i32, i32
  }
}

</mosaic_0001>

<llo_original>
// kernel: tpu_custom_call.1
$region0: #{tpu_custom_call.1}
  #allocation0 [shape = 'u32[]', space=smem, size = 0x4, offset = 0x4, fixed_abs, tag = 'smem constant byte address 0x4 - core index']
  #allocation1 [shape = 'u32[144,128]{1,0:T(1,128)}', space=vmem, size = 0x12000, scoped, tag = 'internal scratch']
  %s0 = inlined_call_operand.vmem [shape: f32[2,16,16,4], index: 0, kind: input, shape index: {}]
  %s1 = inlined_call_operand.vmem [shape: f32[2,16,16,4], index: 1, kind: input, shape index: {}]
  %s2 = inlined_call_operand.vmem [shape: f32[2,16,16,4], index: 2, kind: input, shape index: {}]
  %s3 = inlined_call_operand.vmem [shape: f32[36,2], index: 3, kind: input, shape index: {}]
  %s4 = inlined_call_operand.vmem [shape: f32[2,16,16,2], index: 4, kind: output, shape index: {}]
  %s5 = sld [smem:[#allocation0]]
  $region49: #{tpu_custom_call.1} parent=0
    _
  %s7 = ssub.s32 1, %s5
  %s8 = scalar_select 0, %s7, %s5
  loop: start=0, step=1, limit=4
  $region2: #{tpu_custom_call.1} parent=0 // loop_pre_header
    _
  $region3: #{tpu_custom_call.1} parent=0 // loop_header
    %s10 = sphi 0, %s14
    %p11 = scmp.ge.s32.totalorder %s10, 4
    %s17 = sphi 0, %s29
    %s18 = sphi 0, %s25
    %s19 = sphi 0, %s17
    %s20 = sphi 0, %s18
    %s21 = sphi 0, %s19
    %s22 = sphi 0, %s20
    %s44 = sphi 0, %s46
    %s47 = sphi 0, %s44
    %s48 = sphi 0, %s47
    %s64 = sphi 0, %s48
    %s72 = sphi 0, %s74
    %s75 = sphi 0, %s72
    %s76 = sphi 0, %s75
    %s92 = sphi 0, %s76
    %s112 = sphi 0, %s114
    %s115 = sphi 0, %s112
    %s116 = sphi 0, %s115
    %s132 = sphi 0, %s116
    %s136 = sphi 0, %s136
    %s138 = sphi 0, %s136
    %s139 = sphi 0, %s138
    %s153 = sphi 0, %s139
    %s161 = sphi 0, %s163
    %s164 = sphi 0, %s161
    %s165 = sphi 0, %s164
    %s181 = sphi 0, %s165
  $region4: #{tpu_custom_call.1} parent=0 // loop_header_branch
    %13 = sbr.rel (%p11) target = $region8
  $region5: #{tpu_custom_call.1} parent=0 // loop_body
    %s15 = ssub.s32 %s10, 1
    %s16 = ssub.s32 %s10, 2
    %s23 = sadd.s32 1, %s18
    %p24 = scmp.ge.s32.totalorder %s23, 1
    %s25 = scalar_select %p24, 0, %s23
    %s26 = sadd.s32 1, %s17
    %s27 = scalar_select %p24, %s26, %s17
    %p28 = scmp.ge.s32.totalorder %s27, 2
    %s29 = scalar_select %p28, 0, %s27
    %s30 = smul.u32 %s18, 16
    %s31 = ssub.s32 %s30, 1
    %s32 = sshra.s32 %s31, 31
    %s33 = sadd.s32 %s31, %s32
    %s34 = sxor.u32 %s33, %s32
    %s35 = smul.u32 %s25, 16
    %s36 = ssub.s32 %s35, 1
    %s37 = sshra.s32 %s36, 31
    %s38 = sadd.s32 %s36, %s37
    %s39 = sxor.u32 %s38, %s37
    %s40 = ssub.s32 %s17, %s29
    %s41 = ssub.s32 %s34, %s39
    %s42 = sor.u32 %s40, %s41
    %p43 = scmp.eq.s32.totalorder %s42, 0
    %s45 = sadd.s32 %s44, 1
    %s46 = scalar_select %p43, %s44, %s45
    %p49 = pneg %p43
    %p50 = scmp.eq.s32.totalorder %s10, 1
    %p51 = por %p49, %p50
    %p52 = scmp.ne.s32.totalorder %s44, %s47
    %p53 = scmp.eq.s32.totalorder %s10, 0
    %p54 = por %p52, %p53
    %p55 = scmp.ne.s32.totalorder %s44, %s47
    %p56 = scmp.eq.s32.totalorder %s15, 1
    %p57 = por %p55, %p56
    %p58 = scmp.ne.s32.totalorder %s47, %s48
    %p59 = scmp.eq.s32.totalorder %s15, 0
    %p60 = por %p58, %p59
    %p61 = scmp.ne.s32.totalorder %s47, %s48
    %p62 = scmp.eq.s32.totalorder %s16, 1
    %p63 = por %p61, %p62
    %p65 = scmp.ne.s32.totalorder %s48, %s64
    %p66 = scmp.eq.s32.totalorder %s16, 0
    %p67 = por %p65, %p66
    %s68 = ssub.s32 %s17, %s29
    %s69 = ssub.s32 %s18, %s25
    %s70 = sor.u32 %s68, %s69
    %p71 = scmp.eq.s32.totalorder %s70, 0
    %s73 = sadd.s32 %s72, 1
    %s74 = scalar_select %p71, %s72, %s73
    %p77 = pneg %p71
    %p78 = scmp.eq.s32.totalorder %s10, 1
    %p79 = por %p77, %p78
    %p80 = scmp.ne.s32.totalorder %s72, %s75
    %p81 = scmp.eq.s32.totalorder %s10, 0
    %p82 = por %p80, %p81
    %p83 = scmp.ne.s32.totalorder %s72, %s75
    %p84 = scmp.eq.s32.totalorder %s15, 1
    %p85 = por %p83, %p84
    %p86 = scmp.ne.s32.totalorder %s75, %s76
    %p87 = scmp.eq.s32.totalorder %s15, 0
    %p88 = por %p86, %p87
    %p89 = scmp.ne.s32.totalorder %s75, %s76
    %p90 = scmp.eq.s32.totalorder %s16, 1
    %p91 = por %p89, %p90
    %p93 = scmp.ne.s32.totalorder %s76, %s92
    %p94 = scmp.eq.s32.totalorder %s16, 0
    %p95 = por %p93, %p94
    %s96 = smul.u32 %s18, 16
    %s97 = ssub.s32 4294967295, %s96
    %s98 = sshra.s32 %s97, 31
    %s99 = sadd.s32 %s97, %s98
    %s100 = sxor.u32 %s99, %s98
    %s101 = ssub.s32 15, %s100
    %s102 = smul.u32 %s25, 16
    %s103 = ssub.s32 4294967295, %s102
    %s104 = sshra.s32 %s103, 31
    %s105 = sadd.s32 %s103, %s104
    %s106 = sxor.u32 %s105, %s104
    %s107 = ssub.s32 15, %s106
    %s108 = ssub.s32 %s17, %s29
    %s109 = ssub.s32 %s101, %s107
    %s110 = sor.u32 %s108, %s109
    %p111 = scmp.eq.s32.totalorder %s110, 0
    %s113 = sadd.s32 %s112, 1
    %s114 = scalar_select %p111, %s112, %s113
    %p117 = pneg %p111
    %p118 = scmp.eq.s32.totalorder %s10, 1
    %p119 = por %p117, %p118
    %p120 = scmp.ne.s32.totalorder %s112, %s115
    %p121 = scmp.eq.s32.totalorder %s10, 0
    %p122 = por %p120, %p121
    %p123 = scmp.ne.s32.totalorder %s112, %s115
    %p124 = scmp.eq.s32.totalorder %s15, 1
    %p125 = por %p123, %p124
    %p126 = scmp.ne.s32.totalorder %s115, %s116
    %p127 = scmp.eq.s32.totalorder %s15, 0
    %p128 = por %p126, %p127
    %p129 = scmp.ne.s32.totalorder %s115, %s116
    %p130 = scmp.eq.s32.totalorder %s16, 1
    %p131 = por %p129, %p130
    %p133 = scmp.ne.s32.totalorder %s116, %s132
    %p134 = scmp.eq.s32.totalorder %s16, 0
    %p135 = por %p133, %p134
    %s137 = sadd.s32 %s136, 1
    %p140 = scmp.eq.s32.totalorder %s10, 1
    %p141 = scmp.ne.s32.totalorder %s136, %s138
    %p142 = scmp.eq.s32.totalorder %s10, 0
    %p143 = por %p141, %p142
    %p144 = scmp.ne.s32.totalorder %s136, %s138
    %p145 = scmp.eq.s32.totalorder %s15, 1
    %p146 = por %p144, %p145
    %p147 = scmp.ne.s32.totalorder %s138, %s139
    %p148 = scmp.eq.s32.totalorder %s15, 0
    %p149 = por %p147, %p148
    %p150 = scmp.ne.s32.totalorder %s138, %s139
    %p151 = scmp.eq.s32.totalorder %s16, 1
    %p152 = por %p150, %p151
    %p154 = scmp.ne.s32.totalorder %s139, %s153
    %p155 = scmp.eq.s32.totalorder %s16, 0
    %p156 = por %p154, %p155
    %s157 = ssub.s32 %s17, %s29
    %s158 = ssub.s32 %s18, %s25
    %s159 = sor.u32 %s157, %s158
    %p160 = scmp.eq.s32.totalorder %s159, 0
    %s162 = sadd.s32 %s161, 1
    %s163 = scalar_select %p160, %s161, %s162
    %p166 = pneg %p160
    %p167 = scmp.eq.s32.totalorder %s10, 1
    %p168 = por %p166, %p167
    %p169 = scmp.ne.s32.totalorder %s161, %s164
    %p170 = scmp.eq.s32.totalorder %s10, 0
    %p171 = por %p169, %p170
    %p172 = scmp.ne.s32.totalorder %s161, %s164
    %p173 = scmp.eq.s32.totalorder %s15, 1
    %p174 = por %p172, %p173
    %p175 = scmp.ne.s32.totalorder %s164, %s165
    %p176 = scmp.eq.s32.totalorder %s15, 0
    %p177 = por %p175, %p176
    %p178 = scmp.ne.s32.totalorder %s164, %s165
    %p179 = scmp.eq.s32.totalorder %s16, 1
    %p180 = por %p178, %p179
    %p182 = scmp.ne.s32.totalorder %s165, %s181
    %p183 = scmp.eq.s32.totalorder %s16, 0
    %p184 = por %p182, %p183
    %p185 = scmp.le.s32.totalorder 1, %s10
    %p186 = scmp.lt.s32.totalorder %s10, 3
    %p187 = pnand %p185, %p186
    %p188 = pneg %p187
    // Predicated region
    $region9: #{tpu_custom_call.1} parent=5 // pred_check
      _
    $region10: #{tpu_custom_call.1} parent=5 // pred_check_branch
      %190 = sbr.rel (%p187) target = $region12
    $region11: #{tpu_custom_call.1} parent=5 // pred_region
      %s191 = ssub.s32 %s10, 1
      // Predicated region
      $region13: #{tpu_custom_call.1} parent=11 // pred_check
        %p192 = pneg %p149
      $region14: #{tpu_custom_call.1} parent=11 // pred_check_branch
        %194 = sbr.rel (%p192) target = $region16
      $region15: #{tpu_custom_call.1} parent=11 // pred_region
        _
      $region16: #{tpu_custom_call.1} parent=11 // pred_fallthru
        _
    $region12: #{tpu_custom_call.1} parent=5 // pred_fallthru
      _
    %p195 = scmp.lt.s32.totalorder %s10, 2
    // Predicated region
    $region17: #{tpu_custom_call.1} parent=5 // pred_check
      %p196 = pneg %p195
    $region18: #{tpu_custom_call.1} parent=5 // pred_check_branch
      %198 = sbr.rel (%p196) target = $region20
    $region19: #{tpu_custom_call.1} parent=5 // pred_region
      // Predicated region
      $region21: #{tpu_custom_call.1} parent=19 // pred_check
        %p199 = pneg %p54
      $region22: #{tpu_custom_call.1} parent=19 // pred_check_branch
        %201 = sbr.rel (%p199) target = $region24
      $region23: #{tpu_custom_call.1} parent=19 // pred_region
        %s202 = smul.u32 %s18, 16
        %s203 = ssub.s32 %s202, 1
        %s204 = sshra.s32 %s203, 31
        %s205 = sadd.s32 %s203, %s204
        %s206 = sxor.u32 %s205, %s204
        %p207 = scmp.lt.s32.totalorder %s17, 1
        %s208 = scalar_select %p207, %s17, 1
        %p209 = scmp.lt.s32.totalorder %s206, 15
        %s210 = scalar_select %p209, %s206, 15
        %s211 = smul.addr %s210, 2
        %s212 = smul.addr %s208, 32
        %s213 = sadd.s32 %s211, %s212
        %s214 = smul.addr %s213, 8
        %s215 = scalar_lea.vmem %s0, %s214
        %s216 = smul.u32 %s18, 16
        %s217 = ssub.s32 %s216, 1
        %s218 = sshra.s32 %s217, 31
        %s219 = sadd.s32 %s217, %s218
        %s220 = sxor.u32 %s219, %s218
      $region24: #{tpu_custom_call.1} parent=19 // pred_fallthru
        _
      // Predicated region
      $region25: #{tpu_custom_call.1} parent=19 // pred_check
        %p221 = pneg %p82
      $region26: #{tpu_custom_call.1} parent=19 // pred_check_branch
        %223 = sbr.rel (%p221) target = $region28
      $region27: #{tpu_custom_call.1} parent=19 // pred_region
        %s224 = smul.u32 16, %s18
        %p225 = scmp.lt.s32.totalorder %s17, 1
        %s226 = scalar_select %p225, %s17, 1
        %p227 = scmp.lt.s32.totalorder %s224, 15
        %s228 = scalar_select %p227, %s224, 15
        %s229 = smul.addr %s228, 2
        %s230 = smul.addr %s226, 32
        %s231 = sadd.s32 %s229, %s230
        %s232 = smul.addr %s231, 8
        %s233 = scalar_lea.vmem %s1, %s232
        %s234 = smul.u32 16, %s18
      $region28: #{tpu_custom_call.1} parent=19 // pred_fallthru
        _
      // Predicated region
      $region29: #{tpu_custom_call.1} parent=19 // pred_check
        %p235 = pneg %p122
      $region30: #{tpu_custom_call.1} parent=19 // pred_check_branch
        %237 = sbr.rel (%p235) target = $region32
      $region31: #{tpu_custom_call.1} parent=19 // pred_region
        %s238 = smul.u32 %s18, 16
        %s239 = ssub.s32 4294967295, %s238
        %s240 = sshra.s32 %s239, 31
        %s241 = sadd.s32 %s239, %s240
        %s242 = sxor.u32 %s241, %s240
        %s243 = ssub.s32 15, %s242
        %p244 = scmp.lt.s32.totalorder %s17, 1
        %s245 = scalar_select %p244, %s17, 1
        %p246 = scmp.lt.s32.totalorder %s243, 15
        %s247 = scalar_select %p246, %s243, 15
        %s248 = smul.addr %s247, 2
        %s249 = smul.addr %s245, 32
        %s250 = sadd.s32 %s248, %s249
        %s251 = smul.addr %s250, 8
        %s252 = scalar_lea.vmem %s2, %s251
        %s253 = smul.u32 %s18, 16
        %s254 = ssub.s32 4294967295, %s253
        %s255 = sshra.s32 %s254, 31
        %s256 = sadd.s32 %s254, %s255
        %s257 = sxor.u32 %s256, %s255
        %s258 = ssub.s32 15, %s257
      $region32: #{tpu_custom_call.1} parent=19 // pred_fallthru
        _
    $region20: #{tpu_custom_call.1} parent=5 // pred_fallthru
      _
    %p259 = scmp.le.s32.totalorder 1, %s10
    %p260 = scmp.lt.s32.totalorder %s10, 3
    %p261 = pnand %p259, %p260
    %p262 = pneg %p261
    // Predicated region
    $region33: #{tpu_custom_call.1} parent=5 // pred_check
      _
    $region34: #{tpu_custom_call.1} parent=5 // pred_check_branch
      %264 = sbr.rel (%p261) target = $region36
    $region35: #{tpu_custom_call.1} parent=5 // pred_region
      %s265 = ssub.s32 %s10, 1
      %s266 = smul.u32 %s20, 16
      %s267 = ssub.s32 %s266, 1
      %s268 = sshra.s32 %s267, 31
      %s269 = sadd.s32 %s267, %s268
      %s270 = sxor.u32 %s269, %s268
      %p271 = scmp.lt.s32.totalorder %s19, 1
      %s272 = scalar_select %p271, %s19, 1
      %p273 = scmp.lt.s32.totalorder %s270, 15
      %s274 = scalar_select %p273, %s270, 15
      %s275 = smul.addr %s274, 2
      %s276 = smul.addr %s272, 32
      %s277 = sadd.s32 %s275, %s276
      %s278 = smul.addr %s277, 8
      %s279 = scalar_lea.vmem %s0, %s278
      %p280 = pneg %p60
      %p281 = pneg %p57
      %s282 = smul.u32 16, %s20
      %p283 = scmp.lt.s32.totalorder %s19, 1
      %s284 = scalar_select %p283, %s19, 1
      %p285 = scmp.lt.s32.totalorder %s282, 15
      %s286 = scalar_select %p285, %s282, 15
      %s287 = smul.addr %s286, 2
      %s288 = smul.addr %s284, 32
      %s289 = sadd.s32 %s287, %s288
      %s290 = smul.addr %s289, 8
      %s291 = scalar_lea.vmem %s1, %s290
      %p292 = pneg %p88
      %p293 = pneg %p85
      %s294 = smul.u32 %s20, 16
      %s295 = ssub.s32 4294967295, %s294
      %s296 = sshra.s32 %s295, 31
      %s297 = sadd.s32 %s295, %s296
      %s298 = sxor.u32 %s297, %s296
      %s299 = ssub.s32 15, %s298
      %p300 = scmp.lt.s32.totalorder %s19, 1
      %s301 = scalar_select %p300, %s19, 1
      %p302 = scmp.lt.s32.totalorder %s299, 15
      %s303 = scalar_select %p302, %s299, 15
      %s304 = smul.addr %s303, 2
      %s305 = smul.addr %s301, 32
      %s306 = sadd.s32 %s304, %s305
      %s307 = smul.addr %s306, 8
      %s308 = scalar_lea.vmem %s2, %s307
      %p309 = pneg %p128
      %p310 = pneg %p125
      %p311 = pneg %p149
      %p312 = pneg %p146
      %p313 = pneg %p177
      %p314 = pneg %p174
      %s315 = smul.u32 16, %s20
      %p316 = scmp.lt.s32.totalorder %s19, 1
      %s317 = scalar_select %p316, %s19, 1
      %p318 = scmp.lt.s32.totalorder %s315, 15
      %s319 = scalar_select %p318, %s315, 15
      %s320 = smul.addr %s319, 2
      %s321 = smul.addr %s317, 32
      %s322 = sadd.s32 %s320, %s321
      %s323 = smul.addr %s322, 8
      %s324 = scalar_lea.vmem %s4, %s323
      %s325 = smul.u32 %s20, 16
      %s326 = ssub.s32 %s325, 1
      %s327 = sshra.s32 %s326, 31
      %s328 = sadd.s32 %s326, %s327
      %s329 = sxor.u32 %s328, %s327
      %p330 = scmp.lt.s32.totalorder %s19, 1
      %s331 = scalar_select %p330, %s19, 1
      %p332 = scmp.lt.s32.totalorder %s329, 15
      %s333 = scalar_select %p332, %s329, 15
      %s334 = smul.addr %s333, 2
      %s335 = smul.addr %s331, 32
      %s336 = sadd.s32 %s334, %s335
      %s337 = smul.addr %s336, 8
      %s338 = scalar_lea.vmem %s0, %s337
      %s339 = smul.u32 %s20, 16
      %s340 = ssub.s32 %s339, 1
      %s341 = sshra.s32 %s340, 31
      %s342 = sadd.s32 %s340, %s341
      %s343 = sxor.u32 %s342, %s341
      %s344 = smul.u32 16, %s20
      %p345 = scmp.lt.s32.totalorder %s19, 1
      %s346 = scalar_select %p345, %s19, 1
      %p347 = scmp.lt.s32.totalorder %s344, 15
      %s348 = scalar_select %p347, %s344, 15
      %s349 = smul.addr %s348, 2
      %s350 = smul.addr %s346, 32
      %s351 = sadd.s32 %s349, %s350
      %s352 = smul.addr %s351, 8
      %s353 = scalar_lea.vmem %s1, %s352
      %s354 = smul.u32 16, %s20
      %s355 = smul.u32 %s20, 16
      %s356 = ssub.s32 4294967295, %s355
      %s357 = sshra.s32 %s356, 31
      %s358 = sadd.s32 %s356, %s357
      %s359 = sxor.u32 %s358, %s357
      %s360 = ssub.s32 15, %s359
      %p361 = scmp.lt.s32.totalorder %s19, 1
      %s362 = scalar_select %p361, %s19, 1
      %p363 = scmp.lt.s32.totalorder %s360, 15
      %s364 = scalar_select %p363, %s360, 15
      %s365 = smul.addr %s364, 2
      %s366 = smul.addr %s362, 32
      %s367 = sadd.s32 %s365, %s366
      %s368 = smul.addr %s367, 8
      %s369 = scalar_lea.vmem %s2, %s368
      %s370 = smul.u32 %s20, 16
      %s371 = ssub.s32 4294967295, %s370
      %s372 = sshra.s32 %s371, 31
      %s373 = sadd.s32 %s371, %s372
      %s374 = sxor.u32 %s373, %s372
      %s375 = ssub.s32 15, %s374
      %s376 = smul.u32 16, %s20
      %p377 = scmp.lt.s32.totalorder %s19, 1
      %s378 = scalar_select %p377, %s19, 1
      %p379 = scmp.lt.s32.totalorder %s376, 15
      %s380 = scalar_select %p379, %s376, 15
      %s381 = smul.addr %s380, 2
      %s382 = smul.addr %s378, 32
      %s383 = sadd.s32 %s381, %s382
      %s384 = smul.addr %s383, 8
      %s385 = scalar_lea.vmem %s4, %s384
      %s386 = smul.u32 16, %s20
      %v387 = vld [vmem:[%s338] sm:$0xff]
      %v388 = vld [vmem:[%s338 + $0x8] sm:$0xff]
      %v389 = vld [vmem:[%s353] sm:$0xff]
      %v390 = vld [vmem:[%s353 + $0x8] sm:$0xff]
      %v391 = vld [vmem:[%s353 + $0x10] sm:$0xff]
      %v392 = vld [vmem:[%s353 + $0x18] sm:$0xff]
      %v393 = vld [vmem:[%s353 + $0x20] sm:$0xff]
      %v394 = vld [vmem:[%s353 + $0x28] sm:$0xff]
      %v395 = vld [vmem:[%s353 + $0x30] sm:$0xff]
      %v396 = vld [vmem:[%s353 + $0x38] sm:$0xff]
      %v397 = vld [vmem:[%s353 + $0x40] sm:$0xff]
      %v398 = vld [vmem:[%s353 + $0x48] sm:$0xff]
      %v399 = vld [vmem:[%s353 + $0x50] sm:$0xff]
      %v400 = vld [vmem:[%s353 + $0x58] sm:$0xff]
      %v401 = vld [vmem:[%s353 + $0x60] sm:$0xff]
      %v402 = vld [vmem:[%s353 + $0x68] sm:$0xff]
      %v403 = vld [vmem:[%s353 + $0x70] sm:$0xff]
      %v404 = vld [vmem:[%s353 + $0x78] sm:$0xff]
      %v405 = vld [vmem:[%s353 + $0x80] sm:$0xff]
      %v406 = vld [vmem:[%s353 + $0x88] sm:$0xff]
      %v407 = vld [vmem:[%s353 + $0x90] sm:$0xff]
      %v408 = vld [vmem:[%s353 + $0x98] sm:$0xff]
      %v409 = vld [vmem:[%s353 + $0xa0] sm:$0xff]
      %v410 = vld [vmem:[%s353 + $0xa8] sm:$0xff]
      %v411 = vld [vmem:[%s353 + $0xb0] sm:$0xff]
      %v412 = vld [vmem:[%s353 + $0xb8] sm:$0xff]
      %v413 = vld [vmem:[%s353 + $0xc0] sm:$0xff]
      %v414 = vld [vmem:[%s353 + $0xc8] sm:$0xff]
      %v415 = vld [vmem:[%s353 + $0xd0] sm:$0xff]
      %v416 = vld [vmem:[%s353 + $0xd8] sm:$0xff]
      %v417 = vld [vmem:[%s353 + $0xe0] sm:$0xff]
      %v418 = vld [vmem:[%s353 + $0xe8] sm:$0xff]
      %v419 = vld [vmem:[%s353 + $0xf0] sm:$0xff]
      %v420 = vld [vmem:[%s353 + $0xf8] sm:$0xff]
      %v421 = vld [vmem:[%s369] sm:$0xff]
      %v422 = vld [vmem:[%s369 + $0x8] sm:$0xff]
      %v441 = vrot.slane %v387, 1
      %v442 = vrot.slane %v389, 1
      %v443 = vrot.slane %v391, 1
      %v444 = vrot.slane %v393, 1
      %v445 = vrot.slane %v395, 1
      %v446 = vrot.slane %v397, 1
      %v447 = vrot.slane %v399, 1
      %v448 = vrot.slane %v401, 1
      %v449 = vrot.slane %v403, 1
      %v450 = vrot.slane %v405, 1
      %v451 = vrot.slane %v407, 1
      %v452 = vrot.slane %v409, 1
      %v453 = vrot.slane %v411, 1
      %v454 = vrot.slane %v413, 1
      %v455 = vrot.slane %v415, 1
      %v456 = vrot.slane %v417, 1
      %v457 = vrot.slane %v419, 1
      %v458 = vrot.slane %v421, 1
      %vm495 = vcmask 1040384
      %v496 = vrot.slane %v387, 7
      %v497 = vrot.slane %v388, 7
      %v498 = vsel %vm495, %v496, %v497
      %v499 = vrot.slane %v389, 7
      %v500 = vrot.slane %v390, 7
      %v501 = vsel %vm495, %v499, %v500
      %v502 = vrot.slane %v391, 7
      %v503 = vrot.slane %v392, 7
      %v504 = vsel %vm495, %v502, %v503
      %v505 = vrot.slane %v393, 7
      %v506 = vrot.slane %v394, 7
      %v507 = vsel %vm495, %v505, %v506
      %v508 = vrot.slane %v395, 7
      %v509 = vrot.slane %v396, 7
      %v510 = vsel %vm495, %v508, %v509
      %v511 = vrot.slane %v397, 7
      %v512 = vrot.slane %v398, 7
      %v513 = vsel %vm495, %v511, %v512
      %v514 = vrot.slane %v399, 7
      %v515 = vrot.slane %v400, 7
      %v516 = vsel %vm495, %v514, %v515
      %v517 = vrot.slane %v401, 7
      %v518 = vrot.slane %v402, 7
      %v519 = vsel %vm495, %v517, %v518
      %v520 = vrot.slane %v403, 7
      %v521 = vrot.slane %v404, 7
      %v522 = vsel %vm495, %v520, %v521
      %v523 = vrot.slane %v405, 7
      %v524 = vrot.slane %v406, 7
      %v525 = vsel %vm495, %v523, %v524
      %v526 = vrot.slane %v407, 7
      %v527 = vrot.slane %v408, 7
      %v528 = vsel %vm495, %v526, %v527
      %v529 = vrot.slane %v409, 7
      %v530 = vrot.slane %v410, 7
      %v531 = vsel %vm495, %v529, %v530
      %v532 = vrot.slane %v411, 7
      %v533 = vrot.slane %v412, 7
      %v534 = vsel %vm495, %v532, %v533
      %v535 = vrot.slane %v413, 7
      %v536 = vrot.slane %v414, 7
      %v537 = vsel %vm495, %v535, %v536
      %v538 = vrot.slane %v415, 7
      %v539 = vrot.slane %v416, 7
      %v540 = vsel %vm495, %v538, %v539
      %v541 = vrot.slane %v417, 7
      %v542 = vrot.slane %v418, 7
      %v543 = vsel %vm495, %v541, %v542
      %v544 = vrot.slane %v419, 7
      %v545 = vrot.slane %v420, 7
      %v546 = vsel %vm495, %v544, %v545
      %v547 = vrot.slane %v421, 7
      %v548 = vrot.slane %v422, 7
      %v549 = vsel %vm495, %v547, %v548
      %v602 = vrot.slane %v388, 5
      %v603 = vrot.slane %v390, 5
      %v604 = vrot.slane %v392, 5
      %v605 = vrot.slane %v394, 5
      %v606 = vrot.slane %v396, 5
      %v607 = vrot.slane %v398, 5
      %v608 = vrot.slane %v400, 5
      %v609 = vrot.slane %v402, 5
      %v610 = vrot.slane %v404, 5
      %v611 = vrot.slane %v406, 5
      %v612 = vrot.slane %v408, 5
      %v613 = vrot.slane %v410, 5
      %v614 = vrot.slane %v412, 5
      %v615 = vrot.slane %v414, 5
      %v616 = vrot.slane %v416, 5
      %v617 = vrot.slane %v418, 5
      %v618 = vrot.slane %v420, 5
      %v619 = vrot.slane %v422, 5
      %v638 = vsel %vm495, %v441, %v496
      %v639 = vsel %vm495, %v442, %v499
      %v640 = vsel %vm495, %v443, %v502
      %v641 = vsel %vm495, %v444, %v505
      %v642 = vsel %vm495, %v445, %v508
      %v643 = vsel %vm495, %v446, %v511
      %v644 = vsel %vm495, %v447, %v514
      %v645 = vsel %vm495, %v448, %v517
      %v646 = vsel %vm495, %v449, %v520
      %v647 = vsel %vm495, %v450, %v523
      %v648 = vsel %vm495, %v451, %v526
      %v649 = vsel %vm495, %v452, %v529
      %v650 = vsel %vm495, %v453, %v532
      %v651 = vsel %vm495, %v454, %v535
      %v652 = vsel %vm495, %v455, %v538
      %v653 = vsel %vm495, %v456, %v541
      %v654 = vsel %vm495, %v457, %v544
      %v655 = vsel %vm495, %v458, %v547
      %v656 = vsel %vm495, %v497, %v602
      %v657 = vsel %vm495, %v500, %v603
      %v658 = vsel %vm495, %v503, %v604
      %v659 = vsel %vm495, %v506, %v605
      %v660 = vsel %vm495, %v509, %v606
      %v661 = vsel %vm495, %v512, %v607
      %v662 = vsel %vm495, %v515, %v608
      %v663 = vsel %vm495, %v518, %v609
      %v664 = vsel %vm495, %v521, %v610
      %v665 = vsel %vm495, %v524, %v611
      %v666 = vsel %vm495, %v527, %v612
      %v667 = vsel %vm495, %v530, %v613
      %v668 = vsel %vm495, %v533, %v614
      %v669 = vsel %vm495, %v536, %v615
      %v670 = vsel %vm495, %v539, %v616
      %v671 = vsel %vm495, %v542, %v617
      %v672 = vsel %vm495, %v545, %v618
      %v673 = vsel %vm495, %v548, %v619
      %vm706 = vcmask 1046528
      %v707 = vrot.slane %v638, 1
      %v708 = vrot.slane %v498, 1
      %v709 = vsel %vm706, %v707, %v708
      %v710 = vrot.slane %v656, 1
      %v711 = vsel %vm706, %v708, %v710
      %v712 = vrot.slane %v639, 1
      %v713 = vrot.slane %v501, 1
      %v714 = vsel %vm706, %v712, %v713
      %v715 = vrot.slane %v657, 1
      %v716 = vsel %vm706, %v713, %v715
      %v717 = vrot.slane %v640, 1
      %v718 = vrot.slane %v504, 1
      %v719 = vsel %vm706, %v717, %v718
      %v720 = vrot.slane %v658, 1
      %v721 = vsel %vm706, %v718, %v720
      %v722 = vrot.slane %v641, 1
      %v723 = vrot.slane %v507, 1
      %v724 = vsel %vm706, %v722, %v723
      %v725 = vrot.slane %v659, 1
      %v726 = vsel %vm706, %v723, %v725
      %v727 = vrot.slane %v642, 1
      %v728 = vrot.slane %v510, 1
      %v729 = vsel %vm706, %v727, %v728
      %v730 = vrot.slane %v660, 1
      %v731 = vsel %vm706, %v728, %v730
      %v732 = vrot.slane %v643, 1
      %v733 = vrot.slane %v513, 1
      %v734 = vsel %vm706, %v732, %v733
      %v735 = vrot.slane %v661, 1
      %v736 = vsel %vm706, %v733, %v735
      %v737 = vrot.slane %v644, 1
      %v738 = vrot.slane %v516, 1
      %v739 = vsel %vm706, %v737, %v738
      %v740 = vrot.slane %v662, 1
      %v741 = vsel %vm706, %v738, %v740
      %v742 = vrot.slane %v645, 1
      %v743 = vrot.slane %v519, 1
      %v744 = vsel %vm706, %v742, %v743
      %v745 = vrot.slane %v663, 1
      %v746 = vsel %vm706, %v743, %v745
      %v747 = vrot.slane %v646, 1
      %v748 = vrot.slane %v522, 1
      %v749 = vsel %vm706, %v747, %v748
      %v750 = vrot.slane %v664, 1
      %v751 = vsel %vm706, %v748, %v750
      %v752 = vrot.slane %v647, 1
      %v753 = vrot.slane %v525, 1
      %v754 = vsel %vm706, %v752, %v753
      %v755 = vrot.slane %v665, 1
      %v756 = vsel %vm706, %v753, %v755
      %v757 = vrot.slane %v648, 1
      %v758 = vrot.slane %v528, 1
      %v759 = vsel %vm706, %v757, %v758
      %v760 = vrot.slane %v666, 1
      %v761 = vsel %vm706, %v758, %v760
      %v762 = vrot.slane %v649, 1
      %v763 = vrot.slane %v531, 1
      %v764 = vsel %vm706, %v762, %v763
      %v765 = vrot.slane %v667, 1
      %v766 = vsel %vm706, %v763, %v765
      %v767 = vrot.slane %v650, 1
      %v768 = vrot.slane %v534, 1
      %v769 = vsel %vm706, %v767, %v768
      %v770 = vrot.slane %v668, 1
      %v771 = vsel %vm706, %v768, %v770
      %v772 = vrot.slane %v651, 1
      %v773 = vrot.slane %v537, 1
      %v774 = vsel %vm706, %v772, %v773
      %v775 = vrot.slane %v669, 1
      %v776 = vsel %vm706, %v773, %v775
      %v777 = vrot.slane %v652, 1
      %v778 = vrot.slane %v540, 1
      %v779 = vsel %vm706, %v777, %v778
      %v780 = vrot.slane %v670, 1
      %v781 = vsel %vm706, %v778, %v780
      %v782 = vrot.slane %v653, 1
      %v783 = vrot.slane %v543, 1
      %v784 = vsel %vm706, %v782, %v783
      %v785 = vrot.slane %v671, 1
      %v786 = vsel %vm706, %v783, %v785
      %787 = vrot.lane.b32.xlu0 %v709, 4
      %v788 = vpop.permute.xlu0 %787
      %789 = vrot.lane.b32.xlu0 %v711, 4
      %v790 = vpop.permute.xlu0 %789
      %791 = vrot.lane.b32.xlu0 %v714, 4
      %v792 = vpop.permute.xlu0 %791
      %793 = vrot.lane.b32.xlu0 %v716, 4
      %v794 = vpop.permute.xlu0 %793
      %795 = vrot.lane.b32.xlu0 %v719, 4
      %v796 = vpop.permute.xlu0 %795
      %797 = vrot.lane.b32.xlu0 %v721, 4
      %v798 = vpop.permute.xlu0 %797
      %799 = vrot.lane.b32.xlu0 %v724, 4
      %v800 = vpop.permute.xlu0 %799
      %801 = vrot.lane.b32.xlu0 %v726, 4
      %v802 = vpop.permute.xlu0 %801
      %803 = vrot.lane.b32.xlu0 %v729, 4
      %v804 = vpop.permute.xlu0 %803
      %805 = vrot.lane.b32.xlu0 %v731, 4
      %v806 = vpop.permute.xlu0 %805
      %807 = vrot.lane.b32.xlu0 %v734, 4
      %v808 = vpop.permute.xlu0 %807
      %809 = vrot.lane.b32.xlu0 %v736, 4
      %v810 = vpop.permute.xlu0 %809
      %811 = vrot.lane.b32.xlu0 %v739, 4
      %v812 = vpop.permute.xlu0 %811
      %813 = vrot.lane.b32.xlu0 %v741, 4
      %v814 = vpop.permute.xlu0 %813
      %815 = vrot.lane.b32.xlu0 %v744, 4
      %v816 = vpop.permute.xlu0 %815
      %817 = vrot.lane.b32.xlu0 %v746, 4
      %v818 = vpop.permute.xlu0 %817
      %819 = vrot.lane.b32.xlu0 %v749, 4
      %v820 = vpop.permute.xlu0 %819
      %821 = vrot.lane.b32.xlu0 %v751, 4
      %v822 = vpop.permute.xlu0 %821
      %823 = vrot.lane.b32.xlu0 %v754, 4
      %v824 = vpop.permute.xlu0 %823
      %825 = vrot.lane.b32.xlu0 %v756, 4
      %v826 = vpop.permute.xlu0 %825
      %827 = vrot.lane.b32.xlu0 %v759, 4
      %v828 = vpop.permute.xlu0 %827
      %829 = vrot.lane.b32.xlu0 %v761, 4
      %v830 = vpop.permute.xlu0 %829
      %831 = vrot.lane.b32.xlu0 %v764, 4
      %v832 = vpop.permute.xlu0 %831
      %833 = vrot.lane.b32.xlu0 %v766, 4
      %v834 = vpop.permute.xlu0 %833
      %835 = vrot.lane.b32.xlu0 %v769, 4
      %v836 = vpop.permute.xlu0 %835
      %837 = vrot.lane.b32.xlu0 %v771, 4
      %v838 = vpop.permute.xlu0 %837
      %839 = vrot.lane.b32.xlu0 %v774, 4
      %v840 = vpop.permute.xlu0 %839
      %841 = vrot.lane.b32.xlu0 %v776, 4
      %v842 = vpop.permute.xlu0 %841
      %843 = vrot.lane.b32.xlu0 %v779, 4
      %v844 = vpop.permute.xlu0 %843
      %845 = vrot.lane.b32.xlu0 %v781, 4
      %v846 = vpop.permute.xlu0 %845
      %847 = vrot.lane.b32.xlu0 %v784, 4
      %v848 = vpop.permute.xlu0 %847
      %849 = vrot.lane.b32.xlu0 %v786, 4
      %v850 = vpop.permute.xlu0 %849
      %vm883 = vcmask 1045504
      %v884 = vrot.slane %v638, 2
      %v885 = vrot.slane %v498, 2
      %v886 = vsel %vm883, %v884, %v885
      %v887 = vrot.slane %v656, 2
      %v888 = vsel %vm883, %v885, %v887
      %v889 = vrot.slane %v639, 2
      %v890 = vrot.slane %v501, 2
      %v891 = vsel %vm883, %v889, %v890
      %v892 = vrot.slane %v657, 2
      %v893 = vsel %vm883, %v890, %v892
      %v894 = vrot.slane %v640, 2
      %v895 = vrot.slane %v504, 2
      %v896 = vsel %vm883, %v894, %v895
      %v897 = vrot.slane %v658, 2
      %v898 = vsel %vm883, %v895, %v897
      %v899 = vrot.slane %v641, 2
      %v900 = vrot.slane %v507, 2
      %v901 = vsel %vm883, %v899, %v900
      %v902 = vrot.slane %v659, 2
      %v903 = vsel %vm883, %v900, %v902
      %v904 = vrot.slane %v642, 2
      %v905 = vrot.slane %v510, 2
      %v906 = vsel %vm883, %v904, %v905
      %v907 = vrot.slane %v660, 2
      %v908 = vsel %vm883, %v905, %v907
      %v909 = vrot.slane %v643, 2
      %v910 = vrot.slane %v513, 2
      %v911 = vsel %vm883, %v909, %v910
      %v912 = vrot.slane %v661, 2
      %v913 = vsel %vm883, %v910, %v912
      %v914 = vrot.slane %v644, 2
      %v915 = vrot.slane %v516, 2
      %v916 = vsel %vm883, %v914, %v915
      %v917 = vrot.slane %v662, 2
      %v918 = vsel %vm883, %v915, %v917
      %v919 = vrot.slane %v645, 2
      %v920 = vrot.slane %v519, 2
      %v921 = vsel %vm883, %v919, %v920
      %v922 = vrot.slane %v663, 2
      %v923 = vsel %vm883, %v920, %v922
      %v924 = vrot.slane %v646, 2
      %v925 = vrot.slane %v522, 2
      %v926 = vsel %vm883, %v924, %v925
      %v927 = vrot.slane %v664, 2
      %v928 = vsel %vm883, %v925, %v927
      %v929 = vrot.slane %v647, 2
      %v930 = vrot.slane %v525, 2
      %v931 = vsel %vm883, %v929, %v930
      %v932 = vrot.slane %v665, 2
      %v933 = vsel %vm883, %v930, %v932
      %v934 = vrot.slane %v648, 2
      %v935 = vrot.slane %v528, 2
      %v936 = vsel %vm883, %v934, %v935
      %v937 = vrot.slane %v666, 2
      %v938 = vsel %vm883, %v935, %v937
      %v939 = vrot.slane %v649, 2
      %v940 = vrot.slane %v531, 2
      %v941 = vsel %vm883, %v939, %v940
      %v942 = vrot.slane %v667, 2
      %v943 = vsel %vm883, %v940, %v942
      %v944 = vrot.slane %v650, 2
      %v945 = vrot.slane %v534, 2
      %v946 = vsel %vm883, %v944, %v945
      %v947 = vrot.slane %v668, 2
      %v948 = vsel %vm883, %v945, %v947
      %v949 = vrot.slane %v651, 2
      %v950 = vrot.slane %v537, 2
      %v951 = vsel %vm883, %v949, %v950
      %v952 = vrot.slane %v669, 2
      %v953 = vsel %vm883, %v950, %v952
      %v954 = vrot.slane %v652, 2
      %v955 = vrot.slane %v540, 2
      %v956 = vsel %vm883, %v954, %v955
      %v957 = vrot.slane %v670, 2
      %v958 = vsel %vm883, %v955, %v957
      %v959 = vrot.slane %v653, 2
      %v960 = vrot.slane %v543, 2
      %v961 = vsel %vm883, %v959, %v960
      %v962 = vrot.slane %v671, 2
      %v963 = vsel %vm883, %v960, %v962
      %964 = vrot.lane.b32.xlu0 %v886, 8
      %v965 = vpop.permute.xlu0 %964
      %966 = vrot.lane.b32.xlu0 %v888, 8
      %v967 = vpop.permute.xlu0 %966
      %968 = vrot.lane.b32.xlu0 %v891, 8
      %v969 = vpop.permute.xlu0 %968
      %970 = vrot.lane.b32.xlu0 %v893, 8
      %v971 = vpop.permute.xlu0 %970
      %972 = vrot.lane.b32.xlu0 %v896, 8
      %v973 = vpop.permute.xlu0 %972
      %974 = vrot.lane.b32.xlu0 %v898, 8
      %v975 = vpop.permute.xlu0 %974
      %976 = vrot.lane.b32.xlu0 %v901, 8
      %v977 = vpop.permute.xlu0 %976
      %978 = vrot.lane.b32.xlu0 %v903, 8
      %v979 = vpop.permute.xlu0 %978
      %980 = vrot.lane.b32.xlu0 %v906, 8
      %v981 = vpop.permute.xlu0 %980
      %982 = vrot.lane.b32.xlu0 %v908, 8
      %v983 = vpop.permute.xlu0 %982
      %984 = vrot.lane.b32.xlu0 %v911, 8
      %v985 = vpop.permute.xlu0 %984
      %986 = vrot.lane.b32.xlu0 %v913, 8
      %v987 = vpop.permute.xlu0 %986
      %988 = vrot.lane.b32.xlu0 %v916, 8
      %v989 = vpop.permute.xlu0 %988
      %990 = vrot.lane.b32.xlu0 %v918, 8
      %v991 = vpop.permute.xlu0 %990
      %992 = vrot.lane.b32.xlu0 %v921, 8
      %v993 = vpop.permute.xlu0 %992
      %994 = vrot.lane.b32.xlu0 %v923, 8
      %v995 = vpop.permute.xlu0 %994
      %996 = vrot.lane.b32.xlu0 %v926, 8
      %v997 = vpop.permute.xlu0 %996
      %998 = vrot.lane.b32.xlu0 %v928, 8
      %v999 = vpop.permute.xlu0 %998
      %1000 = vrot.lane.b32.xlu0 %v931, 8
      %v1001 = vpop.permute.xlu0 %1000
      %1002 = vrot.lane.b32.xlu0 %v933, 8
      %v1003 = vpop.permute.xlu0 %1002
      %1004 = vrot.lane.b32.xlu0 %v936, 8
      %v1005 = vpop.permute.xlu0 %1004
      %1006 = vrot.lane.b32.xlu0 %v938, 8
      %v1007 = vpop.permute.xlu0 %1006
      %1008 = vrot.lane.b32.xlu0 %v941, 8
      %v1009 = vpop.permute.xlu0 %1008
      %1010 = vrot.lane.b32.xlu0 %v943, 8
      %v1011 = vpop.permute.xlu0 %1010
      %1012 = vrot.lane.b32.xlu0 %v946, 8
      %v1013 = vpop.permute.xlu0 %1012
      %1014 = vrot.lane.b32.xlu0 %v948, 8
      %v1015 = vpop.permute.xlu0 %1014
      %1016 = vrot.lane.b32.xlu0 %v951, 8
      %v1017 = vpop.permute.xlu0 %1016
      %1018 = vrot.lane.b32.xlu0 %v953, 8
      %v1019 = vpop.permute.xlu0 %1018
      %1020 = vrot.lane.b32.xlu0 %v956, 8
      %v1021 = vpop.permute.xlu0 %1020
      %1022 = vrot.lane.b32.xlu0 %v958, 8
      %v1023 = vpop.permute.xlu0 %1022
      %1024 = vrot.lane.b32.xlu0 %v961, 8
      %v1025 = vpop.permute.xlu0 %1024
      %1026 = vrot.lane.b32.xlu0 %v963, 8
      %v1027 = vpop.permute.xlu0 %1026
      %1061 = vrot.lane.b32.xlu0 %v639, 12
      %v1062 = vpop.permute.xlu0 %1061
      %1063 = vrot.lane.b32.xlu0 %v501, 12
      %v1064 = vpop.permute.xlu0 %1063
      %1065 = vrot.lane.b32.xlu0 %v640, 12
      %v1066 = vpop.permute.xlu0 %1065
      %1067 = vrot.lane.b32.xlu0 %v504, 12
      %v1068 = vpop.permute.xlu0 %1067
      %1069 = vrot.lane.b32.xlu0 %v641, 12
      %v1070 = vpop.permute.xlu0 %1069
      %1071 = vrot.lane.b32.xlu0 %v507, 12
      %v1072 = vpop.permute.xlu0 %1071
      %1073 = vrot.lane.b32.xlu0 %v642, 12
      %v1074 = vpop.permute.xlu0 %1073
      %1075 = vrot.lane.b32.xlu0 %v510, 12
      %v1076 = vpop.permute.xlu0 %1075
      %1077 = vrot.lane.b32.xlu0 %v643, 12
      %v1078 = vpop.permute.xlu0 %1077
      %1079 = vrot.lane.b32.xlu0 %v513, 12
      %v1080 = vpop.permute.xlu0 %1079
      %1081 = vrot.lane.b32.xlu0 %v644, 12
      %v1082 = vpop.permute.xlu0 %1081
      %1083 = vrot.lane.b32.xlu0 %v516, 12
      %v1084 = vpop.permute.xlu0 %1083
      %1085 = vrot.lane.b32.xlu0 %v645, 12
      %v1086 = vpop.permute.xlu0 %1085
      %1087 = vrot.lane.b32.xlu0 %v519, 12
      %v1088 = vpop.permute.xlu0 %1087
      %1089 = vrot.lane.b32.xlu0 %v646, 12
      %v1090 = vpop.permute.xlu0 %1089
      %1091 = vrot.lane.b32.xlu0 %v522, 12
      %v1092 = vpop.permute.xlu0 %1091
      %1093 = vrot.lane.b32.xlu0 %v647, 12
      %v1094 = vpop.permute.xlu0 %1093
      %1095 = vrot.lane.b32.xlu0 %v525, 12
      %v1096 = vpop.permute.xlu0 %1095
      %1097 = vrot.lane.b32.xlu0 %v648, 12
      %v1098 = vpop.permute.xlu0 %1097
      %1099 = vrot.lane.b32.xlu0 %v528, 12
      %v1100 = vpop.permute.xlu0 %1099
      %1101 = vrot.lane.b32.xlu0 %v649, 12
      %v1102 = vpop.permute.xlu0 %1101
      %1103 = vrot.lane.b32.xlu0 %v531, 12
      %v1104 = vpop.permute.xlu0 %1103
      %1105 = vrot.lane.b32.xlu0 %v650, 12
      %v1106 = vpop.permute.xlu0 %1105
      %1107 = vrot.lane.b32.xlu0 %v534, 12
      %v1108 = vpop.permute.xlu0 %1107
      %1109 = vrot.lane.b32.xlu0 %v651, 12
      %v1110 = vpop.permute.xlu0 %1109
      %1111 = vrot.lane.b32.xlu0 %v537, 12
      %v1112 = vpop.permute.xlu0 %1111
      %1113 = vrot.lane.b32.xlu0 %v652, 12
      %v1114 = vpop.permute.xlu0 %1113
      %1115 = vrot.lane.b32.xlu0 %v540, 12
      %v1116 = vpop.permute.xlu0 %1115
      %1117 = vrot.lane.b32.xlu0 %v653, 12
      %v1118 = vpop.permute.xlu0 %1117
      %1119 = vrot.lane.b32.xlu0 %v543, 12
      %v1120 = vpop.permute.xlu0 %1119
      %1121 = vrot.lane.b32.xlu0 %v654, 12
      %v1122 = vpop.permute.xlu0 %1121
      %1123 = vrot.lane.b32.xlu0 %v546, 12
      %v1124 = vpop.permute.xlu0 %1123
      %v1158 = vrot.slane %v654, 1
      %v1159 = vrot.slane %v546, 1
      %v1160 = vsel %vm706, %v1158, %v1159
      %v1161 = vrot.slane %v672, 1
      %v1162 = vsel %vm706, %v1159, %v1161
      %1163 = vrot.lane.b32.xlu0 %v714, 16
      %v1164 = vpop.permute.xlu0 %1163
      %1165 = vrot.lane.b32.xlu0 %v716, 16
      %v1166 = vpop.permute.xlu0 %1165
      %1167 = vrot.lane.b32.xlu0 %v719, 16
      %v1168 = vpop.permute.xlu0 %1167
      %1169 = vrot.lane.b32.xlu0 %v721, 16
      %v1170 = vpop.permute.xlu0 %1169
      %1171 = vrot.lane.b32.xlu0 %v724, 16
      %v1172 = vpop.permute.xlu0 %1171
      %1173 = vrot.lane.b32.xlu0 %v726, 16
      %v1174 = vpop.permute.xlu0 %1173
      %1175 = vrot.lane.b32.xlu0 %v729, 16
      %v1176 = vpop.permute.xlu0 %1175
      %1177 = vrot.lane.b32.xlu0 %v731, 16
      %v1178 = vpop.permute.xlu0 %1177
      %1179 = vrot.lane.b32.xlu0 %v734, 16
      %v1180 = vpop.permute.xlu0 %1179
      %1181 = vrot.lane.b32.xlu0 %v736, 16
      %v1182 = vpop.permute.xlu0 %1181
      %1183 = vrot.lane.b32.xlu0 %v739, 16
      %v1184 = vpop.permute.xlu0 %1183
      %1185 = vrot.lane.b32.xlu0 %v741, 16
      %v1186 = vpop.permute.xlu0 %1185
      %1187 = vrot.lane.b32.xlu0 %v744, 16
      %v1188 = vpop.permute.xlu0 %1187
      %1189 = vrot.lane.b32.xlu0 %v746, 16
      %v1190 = vpop.permute.xlu0 %1189
      %1191 = vrot.lane.b32.xlu0 %v749, 16
      %v1192 = vpop.permute.xlu0 %1191
      %1193 = vrot.lane.b32.xlu0 %v751, 16
      %v1194 = vpop.permute.xlu0 %1193
      %1195 = vrot.lane.b32.xlu0 %v754, 16
      %v1196 = vpop.permute.xlu0 %1195
      %1197 = vrot.lane.b32.xlu0 %v756, 16
      %v1198 = vpop.permute.xlu0 %1197
      %1199 = vrot.lane.b32.xlu0 %v759, 16
      %v1200 = vpop.permute.xlu0 %1199
      %1201 = vrot.lane.b32.xlu0 %v761, 16
      %v1202 = vpop.permute.xlu0 %1201
      %1203 = vrot.lane.b32.xlu0 %v764, 16
      %v1204 = vpop.permute.xlu0 %1203
      %1205 = vrot.lane.b32.xlu0 %v766, 16
      %v1206 = vpop.permute.xlu0 %1205
      %1207 = vrot.lane.b32.xlu0 %v769, 16
      %v1208 = vpop.permute.xlu0 %1207
      %1209 = vrot.lane.b32.xlu0 %v771, 16
      %v1210 = vpop.permute.xlu0 %1209
      %1211 = vrot.lane.b32.xlu0 %v774, 16
      %v1212 = vpop.permute.xlu0 %1211
      %1213 = vrot.lane.b32.xlu0 %v776, 16
      %v1214 = vpop.permute.xlu0 %1213
      %1215 = vrot.lane.b32.xlu0 %v779, 16
      %v1216 = vpop.permute.xlu0 %1215
      %1217 = vrot.lane.b32.xlu0 %v781, 16
      %v1218 = vpop.permute.xlu0 %1217
      %1219 = vrot.lane.b32.xlu0 %v784, 16
      %v1220 = vpop.permute.xlu0 %1219
      %1221 = vrot.lane.b32.xlu0 %v786, 16
      %v1222 = vpop.permute.xlu0 %1221
      %1223 = vrot.lane.b32.xlu0 %v1160, 16
      %v1224 = vpop.permute.xlu0 %1223
      %1225 = vrot.lane.b32.xlu0 %v1162, 16
      %v1226 = vpop.permute.xlu0 %1225
      %v1259 = vrot.slane %v654, 2
      %v1260 = vrot.slane %v546, 2
      %v1261 = vsel %vm883, %v1259, %v1260
      %v1262 = vrot.slane %v672, 2
      %v1263 = vsel %vm883, %v1260, %v1262
      %1264 = vrot.lane.b32.xlu0 %v891, 20
      %v1265 = vpop.permute.xlu0 %1264
      %1266 = vrot.lane.b32.xlu0 %v893, 20
      %v1267 = vpop.permute.xlu0 %1266
      %1268 = vrot.lane.b32.xlu0 %v896, 20
      %v1269 = vpop.permute.xlu0 %1268
      %1270 = vrot.lane.b32.xlu0 %v898, 20
      %v1271 = vpop.permute.xlu0 %1270
      %1272 = vrot.lane.b32.xlu0 %v901, 20
      %v1273 = vpop.permute.xlu0 %1272
      %1274 = vrot.lane.b32.xlu0 %v903, 20
      %v1275 = vpop.permute.xlu0 %1274
      %1276 = vrot.lane.b32.xlu0 %v906, 20
      %v1277 = vpop.permute.xlu0 %1276
      %1278 = vrot.lane.b32.xlu0 %v908, 20
      %v1279 = vpop.permute.xlu0 %1278
      %1280 = vrot.lane.b32.xlu0 %v911, 20
      %v1281 = vpop.permute.xlu0 %1280
      %1282 = vrot.lane.b32.xlu0 %v913, 20
      %v1283 = vpop.permute.xlu0 %1282
      %1284 = vrot.lane.b32.xlu0 %v916, 20
      %v1285 = vpop.permute.xlu0 %1284
      %1286 = vrot.lane.b32.xlu0 %v918, 20
      %v1287 = vpop.permute.xlu0 %1286
      %1288 = vrot.lane.b32.xlu0 %v921, 20
      %v1289 = vpop.permute.xlu0 %1288
      %1290 = vrot.lane.b32.xlu0 %v923, 20
      %v1291 = vpop.permute.xlu0 %1290
      %1292 = vrot.lane.b32.xlu0 %v926, 20
      %v1293 = vpop.permute.xlu0 %1292
      %1294 = vrot.lane.b32.xlu0 %v928, 20
      %v1295 = vpop.permute.xlu0 %1294
      %1296 = vrot.lane.b32.xlu0 %v931, 20
      %v1297 = vpop.permute.xlu0 %1296
      %1298 = vrot.lane.b32.xlu0 %v933, 20
      %v1299 = vpop.permute.xlu0 %1298
      %1300 = vrot.lane.b32.xlu0 %v936, 20
      %v1301 = vpop.permute.xlu0 %1300
      %1302 = vrot.lane.b32.xlu0 %v938, 20
      %v1303 = vpop.permute.xlu0 %1302
      %1304 = vrot.lane.b32.xlu0 %v941, 20
      %v1305 = vpop.permute.xlu0 %1304
      %1306 = vrot.lane.b32.xlu0 %v943, 20
      %v1307 = vpop.permute.xlu0 %1306
      %1308 = vrot.lane.b32.xlu0 %v946, 20
      %v1309 = vpop.permute.xlu0 %1308
      %1310 = vrot.lane.b32.xlu0 %v948, 20
      %v1311 = vpop.permute.xlu0 %1310
      %1312 = vrot.lane.b32.xlu0 %v951, 20
      %v1313 = vpop.permute.xlu0 %1312
      %1314 = vrot.lane.b32.xlu0 %v953, 20
      %v1315 = vpop.permute.xlu0 %1314
      %1316 = vrot.lane.b32.xlu0 %v956, 20
      %v1317 = vpop.permute.xlu0 %1316
      %1318 = vrot.lane.b32.xlu0 %v958, 20
      %v1319 = vpop.permute.xlu0 %1318
      %1320 = vrot.lane.b32.xlu0 %v961, 20
      %v1321 = vpop.permute.xlu0 %1320
      %1322 = vrot.lane.b32.xlu0 %v963, 20
      %v1323 = vpop.permute.xlu0 %1322
      %1324 = vrot.lane.b32.xlu0 %v1261, 20
      %v1325 = vpop.permute.xlu0 %1324
      %1326 = vrot.lane.b32.xlu0 %v1263, 20
      %v1327 = vpop.permute.xlu0 %1326
      %1361 = vrot.lane.b32.xlu0 %v640, 24
      %v1362 = vpop.permute.xlu0 %1361
      %1363 = vrot.lane.b32.xlu0 %v504, 24
      %v1364 = vpop.permute.xlu0 %1363
      %1365 = vrot.lane.b32.xlu0 %v641, 24
      %v1366 = vpop.permute.xlu0 %1365
      %1367 = vrot.lane.b32.xlu0 %v507, 24
      %v1368 = vpop.permute.xlu0 %1367
      %1369 = vrot.lane.b32.xlu0 %v642, 24
      %v1370 = vpop.permute.xlu0 %1369
      %1371 = vrot.lane.b32.xlu0 %v510, 24
      %v1372 = vpop.permute.xlu0 %1371
      %1373 = vrot.lane.b32.xlu0 %v643, 24
      %v1374 = vpop.permute.xlu0 %1373
      %1375 = vrot.lane.b32.xlu0 %v513, 24
      %v1376 = vpop.permute.xlu0 %1375
      %1377 = vrot.lane.b32.xlu0 %v644, 24
      %v1378 = vpop.permute.xlu0 %1377
      %1379 = vrot.lane.b32.xlu0 %v516, 24
      %v1380 = vpop.permute.xlu0 %1379
      %1381 = vrot.lane.b32.xlu0 %v645, 24
      %v1382 = vpop.permute.xlu0 %1381
      %1383 = vrot.lane.b32.xlu0 %v519, 24
      %v1384 = vpop.permute.xlu0 %1383
      %1385 = vrot.lane.b32.xlu0 %v646, 24
      %v1386 = vpop.permute.xlu0 %1385
      %1387 = vrot.lane.b32.xlu0 %v522, 24
      %v1388 = vpop.permute.xlu0 %1387
      %1389 = vrot.lane.b32.xlu0 %v647, 24
      %v1390 = vpop.permute.xlu0 %1389
      %1391 = vrot.lane.b32.xlu0 %v525, 24
      %v1392 = vpop.permute.xlu0 %1391
      %1393 = vrot.lane.b32.xlu0 %v648, 24
      %v1394 = vpop.permute.xlu0 %1393
      %1395 = vrot.lane.b32.xlu0 %v528, 24
      %v1396 = vpop.permute.xlu0 %1395
      %1397 = vrot.lane.b32.xlu0 %v649, 24
      %v1398 = vpop.permute.xlu0 %1397
      %1399 = vrot.lane.b32.xlu0 %v531, 24
      %v1400 = vpop.permute.xlu0 %1399
      %1401 = vrot.lane.b32.xlu0 %v650, 24
      %v1402 = vpop.permute.xlu0 %1401
      %1403 = vrot.lane.b32.xlu0 %v534, 24
      %v1404 = vpop.permute.xlu0 %1403
      %1405 = vrot.lane.b32.xlu0 %v651, 24
      %v1406 = vpop.permute.xlu0 %1405
      %1407 = vrot.lane.b32.xlu0 %v537, 24
      %v1408 = vpop.permute.xlu0 %1407
      %1409 = vrot.lane.b32.xlu0 %v652, 24
      %v1410 = vpop.permute.xlu0 %1409
      %1411 = vrot.lane.b32.xlu0 %v540, 24
      %v1412 = vpop.permute.xlu0 %1411
      %1413 = vrot.lane.b32.xlu0 %v653, 24
      %v1414 = vpop.permute.xlu0 %1413
      %1415 = vrot.lane.b32.xlu0 %v543, 24
      %v1416 = vpop.permute.xlu0 %1415
      %1417 = vrot.lane.b32.xlu0 %v654, 24
      %v1418 = vpop.permute.xlu0 %1417
      %1419 = vrot.lane.b32.xlu0 %v546, 24
      %v1420 = vpop.permute.xlu0 %1419
      %1421 = vrot.lane.b32.xlu0 %v655, 24
      %v1422 = vpop.permute.xlu0 %1421
      %1423 = vrot.lane.b32.xlu0 %v549, 24
      %v1424 = vpop.permute.xlu0 %1423
      %v1458 = vrot.slane %v655, 1
      %v1459 = vrot.slane %v549, 1
      %v1460 = vsel %vm706, %v1458, %v1459
      %v1461 = vrot.slane %v673, 1
      %v1462 = vsel %vm706, %v1459, %v1461
      %1463 = vrot.lane.b32.xlu0 %v719, 28
      %v1464 = vpop.permute.xlu0 %1463
      %1465 = vrot.lane.b32.xlu0 %v721, 28
      %v1466 = vpop.permute.xlu0 %1465
      %1467 = vrot.lane.b32.xlu0 %v724, 28
      %v1468 = vpop.permute.xlu0 %1467
      %1469 = vrot.lane.b32.xlu0 %v726, 28
      %v1470 = vpop.permute.xlu0 %1469
      %1471 = vrot.lane.b32.xlu0 %v729, 28
      %v1472 = vpop.permute.xlu0 %1471
      %1473 = vrot.lane.b32.xlu0 %v731, 28
      %v1474 = vpop.permute.xlu0 %1473
      %1475 = vrot.lane.b32.xlu0 %v734, 28
      %v1476 = vpop.permute.xlu0 %1475
      %1477 = vrot.lane.b32.xlu0 %v736, 28
      %v1478 = vpop.permute.xlu0 %1477
      %1479 = vrot.lane.b32.xlu0 %v739, 28
      %v1480 = vpop.permute.xlu0 %1479
      %1481 = vrot.lane.b32.xlu0 %v741, 28
      %v1482 = vpop.permute.xlu0 %1481
      %1483 = vrot.lane.b32.xlu0 %v744, 28
      %v1484 = vpop.permute.xlu0 %1483
      %1485 = vrot.lane.b32.xlu0 %v746, 28
      %v1486 = vpop.permute.xlu0 %1485
      %1487 = vrot.lane.b32.xlu0 %v749, 28
      %v1488 = vpop.permute.xlu0 %1487
      %1489 = vrot.lane.b32.xlu0 %v751, 28
      %v1490 = vpop.permute.xlu0 %1489
      %1491 = vrot.lane.b32.xlu0 %v754, 28
      %v1492 = vpop.permute.xlu0 %1491
      %1493 = vrot.lane.b32.xlu0 %v756, 28
      %v1494 = vpop.permute.xlu0 %1493
      %1495 = vrot.lane.b32.xlu0 %v759, 28
      %v1496 = vpop.permute.xlu0 %1495
      %1497 = vrot.lane.b32.xlu0 %v761, 28
      %v1498 = vpop.permute.xlu0 %1497
      %1499 = vrot.lane.b32.xlu0 %v764, 28
      %v1500 = vpop.permute.xlu0 %1499
      %1501 = vrot.lane.b32.xlu0 %v766, 28
      %v1502 = vpop.permute.xlu0 %1501
      %1503 = vrot.lane.b32.xlu0 %v769, 28
      %v1504 = vpop.permute.xlu0 %1503
      %1505 = vrot.lane.b32.xlu0 %v771, 28
      %v1506 = vpop.permute.xlu0 %1505
      %1507 = vrot.lane.b32.xlu0 %v774, 28
      %v1508 = vpop.permute.xlu0 %1507
      %1509 = vrot.lane.b32.xlu0 %v776, 28
      %v1510 = vpop.permute.xlu0 %1509
      %1511 = vrot.lane.b32.xlu0 %v779, 28
      %v1512 = vpop.permute.xlu0 %1511
      %1513 = vrot.lane.b32.xlu0 %v781, 28
      %v1514 = vpop.permute.xlu0 %1513
      %1515 = vrot.lane.b32.xlu0 %v784, 28
      %v1516 = vpop.permute.xlu0 %1515
      %1517 = vrot.lane.b32.xlu0 %v786, 28
      %v1518 = vpop.permute.xlu0 %1517
      %1519 = vrot.lane.b32.xlu0 %v1160, 28
      %v1520 = vpop.permute.xlu0 %1519
      %1521 = vrot.lane.b32.xlu0 %v1162, 28
      %v1522 = vpop.permute.xlu0 %1521
      %1523 = vrot.lane.b32.xlu0 %v1460, 28
      %v1524 = vpop.permute.xlu0 %1523
      %1525 = vrot.lane.b32.xlu0 %v1462, 28
      %v1526 = vpop.permute.xlu0 %1525
      %v1559 = vrot.slane %v655, 2
      %v1560 = vrot.slane %v549, 2
      %v1561 = vsel %vm883, %v1559, %v1560
      %v1562 = vrot.slane %v673, 2
      %v1563 = vsel %vm883, %v1560, %v1562
      %1564 = vrot.lane.b32.xlu0 %v896, 32
      %v1565 = vpop.permute.xlu0 %1564
      %1566 = vrot.lane.b32.xlu0 %v898, 32
      %v1567 = vpop.permute.xlu0 %1566
      %1568 = vrot.lane.b32.xlu0 %v901, 32
      %v1569 = vpop.permute.xlu0 %1568
      %1570 = vrot.lane.b32.xlu0 %v903, 32
      %v1571 = vpop.permute.xlu0 %1570
      %1572 = vrot.lane.b32.xlu0 %v906, 32
      %v1573 = vpop.permute.xlu0 %1572
      %1574 = vrot.lane.b32.xlu0 %v908, 32
      %v1575 = vpop.permute.xlu0 %1574
      %1576 = vrot.lane.b32.xlu0 %v911, 32
      %v1577 = vpop.permute.xlu0 %1576
      %1578 = vrot.lane.b32.xlu0 %v913, 32
      %v1579 = vpop.permute.xlu0 %1578
      %1580 = vrot.lane.b32.xlu0 %v916, 32
      %v1581 = vpop.permute.xlu0 %1580
      %1582 = vrot.lane.b32.xlu0 %v918, 32
      %v1583 = vpop.permute.xlu0 %1582
      %1584 = vrot.lane.b32.xlu0 %v921, 32
      %v1585 = vpop.permute.xlu0 %1584
      %1586 = vrot.lane.b32.xlu0 %v923, 32
      %v1587 = vpop.permute.xlu0 %1586
      %1588 = vrot.lane.b32.xlu0 %v926, 32
      %v1589 = vpop.permute.xlu0 %1588
      %1590 = vrot.lane.b32.xlu0 %v928, 32
      %v1591 = vpop.permute.xlu0 %1590
      %1592 = vrot.lane.b32.xlu0 %v931, 32
      %v1593 = vpop.permute.xlu0 %1592
      %1594 = vrot.lane.b32.xlu0 %v933, 32
      %v1595 = vpop.permute.xlu0 %1594
      %1596 = vrot.lane.b32.xlu0 %v936, 32
      %v1597 = vpop.permute.xlu0 %1596
      %1598 = vrot.lane.b32.xlu0 %v938, 32
      %v1599 = vpop.permute.xlu0 %1598
      %1600 = vrot.lane.b32.xlu0 %v941, 32
      %v1601 = vpop.permute.xlu0 %1600
      %1602 = vrot.lane.b32.xlu0 %v943, 32
      %v1603 = vpop.permute.xlu0 %1602
      %1604 = vrot.lane.b32.xlu0 %v946, 32
      %v1605 = vpop.permute.xlu0 %1604
      %1606 = vrot.lane.b32.xlu0 %v948, 32
      %v1607 = vpop.permute.xlu0 %1606
      %1608 = vrot.lane.b32.xlu0 %v951, 32
      %v1609 = vpop.permute.xlu0 %1608
      %1610 = vrot.lane.b32.xlu0 %v953, 32
      %v1611 = vpop.permute.xlu0 %1610
      %1612 = vrot.lane.b32.xlu0 %v956, 32
      %v1613 = vpop.permute.xlu0 %1612
      %1614 = vrot.lane.b32.xlu0 %v958, 32
      %v1615 = vpop.permute.xlu0 %1614
      %1616 = vrot.lane.b32.xlu0 %v961, 32
      %v1617 = vpop.permute.xlu0 %1616
      %1618 = vrot.lane.b32.xlu0 %v963, 32
      %v1619 = vpop.permute.xlu0 %1618
      %1620 = vrot.lane.b32.xlu0 %v1261, 32
      %v1621 = vpop.permute.xlu0 %1620
      %1622 = vrot.lane.b32.xlu0 %v1263, 32
      %v1623 = vpop.permute.xlu0 %1622
      %1624 = vrot.lane.b32.xlu0 %v1561, 32
      %v1625 = vpop.permute.xlu0 %1624
      %1626 = vrot.lane.b32.xlu0 %v1563, 32
      %v1627 = vpop.permute.xlu0 %1626
      %vm1660 = vcmask 31744
      %v1661 = vsel %vm1660, %v638, %v788
      %v1662 = vsel %vm1660, %v498, %v790
      %v1663 = vsel %vm1660, %v639, %v792
      %v1664 = vsel %vm1660, %v501, %v794
      %v1665 = vsel %vm1660, %v640, %v796
      %v1666 = vsel %vm1660, %v504, %v798
      %v1667 = vsel %vm1660, %v641, %v800
      %v1668 = vsel %vm1660, %v507, %v802
      %v1669 = vsel %vm1660, %v642, %v804
      %v1670 = vsel %vm1660, %v510, %v806
      %v1671 = vsel %vm1660, %v643, %v808
      %v1672 = vsel %vm1660, %v513, %v810
      %v1673 = vsel %vm1660, %v644, %v812
      %v1674 = vsel %vm1660, %v516, %v814
      %v1675 = vsel %vm1660, %v645, %v816
      %v1676 = vsel %vm1660, %v519, %v818
      %v1677 = vsel %vm1660, %v646, %v820
      %v1678 = vsel %vm1660, %v522, %v822
      %v1679 = vsel %vm1660, %v647, %v824
      %v1680 = vsel %vm1660, %v525, %v826
      %v1681 = vsel %vm1660, %v648, %v828
      %v1682 = vsel %vm1660, %v528, %v830
      %v1683 = vsel %vm1660, %v649, %v832
      %v1684 = vsel %vm1660, %v531, %v834
      %v1685 = vsel %vm1660, %v650, %v836
      %v1686 = vsel %vm1660, %v534, %v838
      %v1687 = vsel %vm1660, %v651, %v840
      %v1688 = vsel %vm1660, %v537, %v842
      %v1689 = vsel %vm1660, %v652, %v844
      %v1690 = vsel %vm1660, %v540, %v846
      %v1691 = vsel %vm1660, %v653, %v848
      %v1692 = vsel %vm1660, %v543, %v850
      %vm1693 = vcmask 64512
      %v1694 = vsel %vm1693, %v1661, %v965
      %v1695 = vsel %vm1693, %v1662, %v967
      %v1696 = vsel %vm1693, %v1663, %v969
      %v1697 = vsel %vm1693, %v1664, %v971
      %v1698 = vsel %vm1693, %v1665, %v973
      %v1699 = vsel %vm1693, %v1666, %v975
      %v1700 = vsel %vm1693, %v1667, %v977
      %v1701 = vsel %vm1693, %v1668, %v979
      %v1702 = vsel %vm1693, %v1669, %v981
      %v1703 = vsel %vm1693, %v1670, %v983
      %v1704 = vsel %vm1693, %v1671, %v985
      %v1705 = vsel %vm1693, %v1672, %v987
      %v1706 = vsel %vm1693, %v1673, %v989
      %v1707 = vsel %vm1693, %v1674, %v991
      %v1708 = vsel %vm1693, %v1675, %v993
      %v1709 = vsel %vm1693, %v1676, %v995
      %v1710 = vsel %vm1693, %v1677, %v997
      %v1711 = vsel %vm1693, %v1678, %v999
      %v1712 = vsel %vm1693, %v1679, %v1001
      %v1713 = vsel %vm1693, %v1680, %v1003
      %v1714 = vsel %vm1693, %v1681, %v1005
      %v1715 = vsel %vm1693, %v1682, %v1007
      %v1716 = vsel %vm1693, %v1683, %v1009
      %v1717 = vsel %vm1693, %v1684, %v1011
      %v1718 = vsel %vm1693, %v1685, %v1013
      %v1719 = vsel %vm1693, %v1686, %v1015
      %v1720 = vsel %vm1693, %v1687, %v1017
      %v1721 = vsel %vm1693, %v1688, %v1019
      %v1722 = vsel %vm1693, %v1689, %v1021
      %v1723 = vsel %vm1693, %v1690, %v1023
      %v1724 = vsel %vm1693, %v1691, %v1025
      %v1725 = vsel %vm1693, %v1692, %v1027
      %vm1726 = vcmask 97280
      %v1727 = vsel %vm1726, %v1694, %v1062
      %v1728 = vsel %vm1726, %v1695, %v1064
      %v1729 = vsel %vm1726, %v1696, %v1066
      %v1730 = vsel %vm1726, %v1697, %v1068
      %v1731 = vsel %vm1726, %v1698, %v1070
      %v1732 = vsel %vm1726, %v1699, %v1072
      %v1733 = vsel %vm1726, %v1700, %v1074
      %v1734 = vsel %vm1726, %v1701, %v1076
      %v1735 = vsel %vm1726, %v1702, %v1078
      %v1736 = vsel %vm1726, %v1703, %v1080
      %v1737 = vsel %vm1726, %v1704, %v1082
      %v1738 = vsel %vm1726, %v1705, %v1084
      %v1739 = vsel %vm1726, %v1706, %v1086
      %v1740 = vsel %vm1726, %v1707, %v1088
      %v1741 = vsel %vm1726, %v1708, %v1090
      %v1742 = vsel %vm1726, %v1709, %v1092
      %v1743 = vsel %vm1726, %v1710, %v1094
      %v1744 = vsel %vm1726, %v1711, %v1096
      %v1745 = vsel %vm1726, %v1712, %v1098
      %v1746 = vsel %vm1726, %v1713, %v1100
      %v1747 = vsel %vm1726, %v1714, %v1102
      %v1748 = vsel %vm1726, %v1715, %v1104
      %v1749 = vsel %vm1726, %v1716, %v1106
      %v1750 = vsel %vm1726, %v1717, %v1108
      %v1751 = vsel %vm1726, %v1718, %v1110
      %v1752 = vsel %vm1726, %v1719, %v1112
      %v1753 = vsel %vm1726, %v1720, %v1114
      %v1754 = vsel %vm1726, %v1721, %v1116
      %v1755 = vsel %vm1726, %v1722, %v1118
      %v1756 = vsel %vm1726, %v1723, %v1120
      %v1757 = vsel %vm1726, %v1724, %v1122
      %v1758 = vsel %vm1726, %v1725, %v1124
      %vm1759 = vcmask 130048
      %v1760 = vsel %vm1759, %v1727, %v1164
      %v1761 = vsel %vm1759, %v1728, %v1166
      %v1762 = vsel %vm1759, %v1729, %v1168
      %v1763 = vsel %vm1759, %v1730, %v1170
      %v1764 = vsel %vm1759, %v1731, %v1172
      %v1765 = vsel %vm1759, %v1732, %v1174
      %v1766 = vsel %vm1759, %v1733, %v1176
      %v1767 = vsel %vm1759, %v1734, %v1178
      %v1768 = vsel %vm1759, %v1735, %v1180
      %v1769 = vsel %vm1759, %v1736, %v1182
      %v1770 = vsel %vm1759, %v1737, %v1184
      %v1771 = vsel %vm1759, %v1738, %v1186
      %v1772 = vsel %vm1759, %v1739, %v1188
      %v1773 = vsel %vm1759, %v1740, %v1190
      %v1774 = vsel %vm1759, %v1741, %v1192
      %v1775 = vsel %vm1759, %v1742, %v1194
      %v1776 = vsel %vm1759, %v1743, %v1196
      %v1777 = vsel %vm1759, %v1744, %v1198
      %v1778 = vsel %vm1759, %v1745, %v1200
      %v1779 = vsel %vm1759, %v1746, %v1202
      %v1780 = vsel %vm1759, %v1747, %v1204
      %v1781 = vsel %vm1759, %v1748, %v1206
      %v1782 = vsel %vm1759, %v1749, %v1208
      %v1783 = vsel %vm1759, %v1750, %v1210
      %v1784 = vsel %vm1759, %v1751, %v1212
      %v1785 = vsel %vm1759, %v1752, %v1214
      %v1786 = vsel %vm1759, %v1753, %v1216
      %v1787 = vsel %vm1759, %v1754, %v1218
      %v1788 = vsel %vm1759, %v1755, %v1220
      %v1789 = vsel %vm1759, %v1756, %v1222
      %v1790 = vsel %vm1759, %v1757, %v1224
      %v1791 = vsel %vm1759, %v1758, %v1226
      %vm1792 = vcmask 162816
      %v1793 = vsel %vm1792, %v1760, %v1265
      %v1794 = vsel %vm1792, %v1761, %v1267
      %v1795 = vsel %vm1792, %v1762, %v1269
      %v1796 = vsel %vm1792, %v1763, %v1271
      %v1797 = vsel %vm1792, %v1764, %v1273
      %v1798 = vsel %vm1792, %v1765, %v1275
      %v1799 = vsel %vm1792, %v1766, %v1277
      %v1800 = vsel %vm1792, %v1767, %v1279
      %v1801 = vsel %vm1792, %v1768, %v1281
      %v1802 = vsel %vm1792, %v1769, %v1283
      %v1803 = vsel %vm1792, %v1770, %v1285
      %v1804 = vsel %vm1792, %v1771, %v1287
      %v1805 = vsel %vm1792, %v1772, %v1289
      %v1806 = vsel %vm1792, %v1773, %v1291
      %v1807 = vsel %vm1792, %v1774, %v1293
      %v1808 = vsel %vm1792, %v1775, %v1295
      %v1809 = vsel %vm1792, %v1776, %v1297
      %v1810 = vsel %vm1792, %v1777, %v1299
      %v1811 = vsel %vm1792, %v1778, %v1301
      %v1812 = vsel %vm1792, %v1779, %v1303
      %v1813 = vsel %vm1792, %v1780, %v1305
      %v1814 = vsel %vm1792, %v1781, %v1307
      %v1815 = vsel %vm1792, %v1782, %v1309
      %v1816 = vsel %vm1792, %v1783, %v1311
      %v1817 = vsel %vm1792, %v1784, %v1313
      %v1818 = vsel %vm1792, %v1785, %v1315
      %v1819 = vsel %vm1792, %v1786, %v1317
      %v1820 = vsel %vm1792, %v1787, %v1319
      %v1821 = vsel %vm1792, %v1788, %v1321
      %v1822 = vsel %vm1792, %v1789, %v1323
      %v1823 = vsel %vm1792, %v1790, %v1325
      %v1824 = vsel %vm1792, %v1791, %v1327
      %vm1825 = vcmask 195584
      %v1826 = vsel %vm1825, %v1793, %v1362
      %v1827 = vsel %vm1825, %v1794, %v1364
      %v1828 = vsel %vm1825, %v1795, %v1366
      %v1829 = vsel %vm1825, %v1796, %v1368
      %v1830 = vsel %vm1825, %v1797, %v1370
      %v1831 = vsel %vm1825, %v1798, %v1372
      %v1832 = vsel %vm1825, %v1799, %v1374
      %v1833 = vsel %vm1825, %v1800, %v1376
      %v1834 = vsel %vm1825, %v1801, %v1378
      %v1835 = vsel %vm1825, %v1802, %v1380
      %v1836 = vsel %vm1825, %v1803, %v1382
      %v1837 = vsel %vm1825, %v1804, %v1384
      %v1838 = vsel %vm1825, %v1805, %v1386
      %v1839 = vsel %vm1825, %v1806, %v1388
      %v1840 = vsel %vm1825, %v1807, %v1390
      %v1841 = vsel %vm1825, %v1808, %v1392
      %v1842 = vsel %vm1825, %v1809, %v1394
      %v1843 = vsel %vm1825, %v1810, %v1396
      %v1844 = vsel %vm1825, %v1811, %v1398
      %v1845 = vsel %vm1825, %v1812, %v1400
      %v1846 = vsel %vm1825, %v1813, %v1402
      %v1847 = vsel %vm1825, %v1814, %v1404
      %v1848 = vsel %vm1825, %v1815, %v1406
      %v1849 = vsel %vm1825, %v1816, %v1408
      %v1850 = vsel %vm1825, %v1817, %v1410
      %v1851 = vsel %vm1825, %v1818, %v1412
      %v1852 = vsel %vm1825, %v1819, %v1414
      %v1853 = vsel %vm1825, %v1820, %v1416
      %v1854 = vsel %vm1825, %v1821, %v1418
      %v1855 = vsel %vm1825, %v1822, %v1420
      %v1856 = vsel %vm1825, %v1823, %v1422
      %v1857 = vsel %vm1825, %v1824, %v1424
      %vm1858 = vcmask 228352
      %v1859 = vsel %vm1858, %v1826, %v1464
      %v1860 = vsel %vm1858, %v1827, %v1466
      %v1861 = vsel %vm1858, %v1828, %v1468
      %v1862 = vsel %vm1858, %v1829, %v1470
      %v1863 = vsel %vm1858, %v1830, %v1472
      %v1864 = vsel %vm1858, %v1831, %v1474
      %v1865 = vsel %vm1858, %v1832, %v1476
      %v1866 = vsel %vm1858, %v1833, %v1478
      %v1867 = vsel %vm1858, %v1834, %v1480
      %v1868 = vsel %vm1858, %v1835, %v1482
      %v1869 = vsel %vm1858, %v1836, %v1484
      %v1870 = vsel %vm1858, %v1837, %v1486
      %v1871 = vsel %vm1858, %v1838, %v1488
      %v1872 = vsel %vm1858, %v1839, %v1490
      %v1873 = vsel %vm1858, %v1840, %v1492
      %v1874 = vsel %vm1858, %v1841, %v1494
      %v1875 = vsel %vm1858, %v1842, %v1496
      %v1876 = vsel %vm1858, %v1843, %v1498
      %v1877 = vsel %vm1858, %v1844, %v1500
      %v1878 = vsel %vm1858, %v1845, %v1502
      %v1879 = vsel %vm1858, %v1846, %v1504
      %v1880 = vsel %vm1858, %v1847, %v1506
      %v1881 = vsel %vm1858, %v1848, %v1508
      %v1882 = vsel %vm1858, %v1849, %v1510
      %v1883 = vsel %vm1858, %v1850, %v1512
      %v1884 = vsel %vm1858, %v1851, %v1514
      %v1885 = vsel %vm1858, %v1852, %v1516
      %v1886 = vsel %vm1858, %v1853, %v1518
      %v1887 = vsel %vm1858, %v1854, %v1520
      %v1888 = vsel %vm1858, %v1855, %v1522
      %v1889 = vsel %vm1858, %v1856, %v1524
      %v1890 = vsel %vm1858, %v1857, %v1526
      %vm1891 = vcmask 261120
      %v1892 = vsel %vm1891, %v1859, %v1565
      %v1893 = vsel %vm1891, %v1860, %v1567
      %v1894 = vsel %vm1891, %v1861, %v1569
      %v1895 = vsel %vm1891, %v1862, %v1571
      %v1896 = vsel %vm1891, %v1863, %v1573
      %v1897 = vsel %vm1891, %v1864, %v1575
      %v1898 = vsel %vm1891, %v1865, %v1577
      %v1899 = vsel %vm1891, %v1866, %v1579
      %v1900 = vsel %vm1891, %v1867, %v1581
      %v1901 = vsel %vm1891, %v1868, %v1583
      %v1902 = vsel %vm1891, %v1869, %v1585
      %v1903 = vsel %vm1891, %v1870, %v1587
      %v1904 = vsel %vm1891, %v1871, %v1589
      %v1905 = vsel %vm1891, %v1872, %v1591
      %v1906 = vsel %vm1891, %v1873, %v1593
      %v1907 = vsel %vm1891, %v1874, %v1595
      %v1908 = vsel %vm1891, %v1875, %v1597
      %v1909 = vsel %vm1891, %v1876, %v1599
      %v1910 = vsel %vm1891, %v1877, %v1601
      %v1911 = vsel %vm1891, %v1878, %v1603
      %v1912 = vsel %vm1891, %v1879, %v1605
      %v1913 = vsel %vm1891, %v1880, %v1607
      %v1914 = vsel %vm1891, %v1881, %v1609
      %v1915 = vsel %vm1891, %v1882, %v1611
      %v1916 = vsel %vm1891, %v1883, %v1613
      %v1917 = vsel %vm1891, %v1884, %v1615
      %v1918 = vsel %vm1891, %v1885, %v1617
      %v1919 = vsel %vm1891, %v1886, %v1619
      %v1920 = vsel %vm1891, %v1887, %v1621
      %v1921 = vsel %vm1891, %v1888, %v1623
      %v1922 = vsel %vm1891, %v1889, %v1625
      %v1923 = vsel %vm1891, %v1890, %v1627
      %v1924 = vld [vmem:[%s3] sm:$0xff]
      %v1925 = vld [vmem:[%s3 + $0x8] sm:$0xff]
      %v1926 = vld [vmem:[%s3 + $0x10] sm:$0xff]
      %v1927 = vld [vmem:[%s3 + $0x18] sm:$0xff]
      %v1928 = vld [vmem:[%s3 + $0x20] sm:$0xf]
      %vm1929 = vcmask 293888
      %v1931 = vsel %vm1929, %v1892, 0
      %v1934 = vsel %vm1929, %v1893, 0
      %v1937 = vsel %vm1929, %v1894, 0
      %v1940 = vsel %vm1929, %v1895, 0
      %v1943 = vsel %vm1929, %v1896, 0
      %v1946 = vsel %vm1929, %v1897, 0
      %v1949 = vsel %vm1929, %v1898, 0
      %v1952 = vsel %vm1929, %v1899, 0
      %v1955 = vsel %vm1929, %v1900, 0
      %v1958 = vsel %vm1929, %v1901, 0
      %v1961 = vsel %vm1929, %v1902, 0
      %v1964 = vsel %vm1929, %v1903, 0
      %v1967 = vsel %vm1929, %v1904, 0
      %v1970 = vsel %vm1929, %v1905, 0
      %v1973 = vsel %vm1929, %v1906, 0
      %v1976 = vsel %vm1929, %v1907, 0
      %v1979 = vsel %vm1929, %v1908, 0
      %v1982 = vsel %vm1929, %v1909, 0
      %v1985 = vsel %vm1929, %v1910, 0
      %v1988 = vsel %vm1929, %v1911, 0
      %v1991 = vsel %vm1929, %v1912, 0
      %v1994 = vsel %vm1929, %v1913, 0
      %v1997 = vsel %vm1929, %v1914, 0
      %v2000 = vsel %vm1929, %v1915, 0
      %v2003 = vsel %vm1929, %v1916, 0
      %v2006 = vsel %vm1929, %v1917, 0
      %v2009 = vsel %vm1929, %v1918, 0
      %v2012 = vsel %vm1929, %v1919, 0
      %v2015 = vsel %vm1929, %v1920, 0
      %v2018 = vsel %vm1929, %v1921, 0
      %v2021 = vsel %vm1929, %v1922, 0
      %v2024 = vsel %vm1929, %v1923, 0
      %vm2026 = vcmask 1043456
      %v2028 = vsel %vm2026, %v1928, 0
      %2030 = vmatprep.subr.mxu0 0.0
      %2031 = vmatpush1.msra.mxu0 %v1924
      %2032 = vmatprep.subr.mxu0 0.0
      %2033 = vmatpush1.msra.mxu0 %v1925
      %2034 = vmatprep.subr.mxu0 0.0
      %2035 = vmatpush1.msra.mxu0 %v1926
      %2036 = vmatprep.subr.mxu0 0.0
      %2037 = vmatpush1.msra.mxu0 %v1927
      %2038 = vmatprep.subr.mxu0 0.0
      %2039 = vmatpush1.msra.mxu0 %v2028
      %2040 = vmatprep.subr.mxu0 0.0
      %2041 = vmatpush1.msra.mxu0 0.0
      %2042 = vmatprep.subr.mxu0 0.0
      %2043 = vmatpush1.msra.mxu0 0.0
      %2044 = vmatprep.subr.mxu0 0.0
      %2045 = vmatpush1.msra.mxu0 0.0
      %2046 = vmatprep.subr.mxu0 0.0
      %2047 = vmatpush1.msra.mxu0 0.0
      %2048 = vmatprep.subr.mxu0 0.0
      %2049 = vmatpush1.msra.mxu0 0.0
      %2050 = vmatprep.subr.mxu0 0.0
      %2051 = vmatpush1.msra.mxu0 0.0
      %2052 = vmatprep.subr.mxu0 0.0
      %2053 = vmatpush1.msra.mxu0 0.0
      %2054 = vmatprep.subr.mxu0 0.0
      %2055 = vmatpush1.msra.mxu0 0.0
      %2056 = vmatprep.subr.mxu0 0.0
      %2057 = vmatpush1.msra.mxu0 0.0
      %2058 = vmatprep.subr.mxu0 0.0
      %2059 = vmatpush1.msra.mxu0 0.0
      %2060 = vmatprep.subr.mxu0 0.0
      %2061 = vmatpush1.msra.mxu0 0.0
      %2062 = vmatprep.subr.mxu0 0.0
      %2063 = vmatpush1.msra.mxu0 0.0
      %2064 = vmatprep.subr.mxu0 0.0
      %2065 = vmatpush1.msra.mxu0 0.0
      %2066 = vmatprep.subr.mxu0 0.0
      %2067 = vmatpush1.msra.mxu0 0.0
      %2068 = vmatprep.subr.mxu0 0.0
      %2069 = vmatpush1.msra.mxu0 0.0
      %2070 = vmatprep.subr.mxu0 0.0
      %2071 = vmatpush1.msra.mxu0 0.0
      %2072 = vmatprep.subr.mxu0 0.0
      %2073 = vmatpush1.msra.mxu0 0.0
      %2074 = vmatprep.subr.mxu0 0.0
      %2075 = vmatpush1.msra.mxu0 0.0
      %2076 = vmatprep.subr.mxu0 0.0
      %2077 = vmatpush1.msra.mxu0 0.0
      %2078 = vmatprep.subr.mxu0 0.0
      %2079 = vmatpush1.msra.mxu0 0.0
      %2080 = vmatprep.subr.mxu0 0.0
      %2081 = vmatpush1.msra.mxu0 0.0
      %2082 = vmatprep.subr.mxu0 0.0
      %2083 = vmatpush1.msra.mxu0 0.0
      %2084 = vmatprep.subr.mxu0 0.0
      %2085 = vmatpush1.msra.mxu0 0.0
      %2086 = vmatprep.subr.mxu0 0.0
      %2087 = vmatpush1.msra.mxu0 0.0
      %2088 = vmatprep.subr.mxu0 0.0
      %2089 = vmatpush1.msra.mxu0 0.0
      %2090 = vmatprep.subr.mxu0 0.0
      %2091 = vmatpush1.msra.mxu0 0.0
      %2092 = vmatprep.subr.mxu0 0.0
      %2093 = vmatpush1.msra.mxu0 0.0
      %2094 = vmatprep.mubr.f32.mxu0 0.0
      %2095 = vmatmul.mubr.f32.gmra.mrb[0].mxu0 %v1931
      %v2096 = vpop.f32.mrb[0].mxu0
      %v2097 = vadd.f32 0.0, %v2096
      %v2098 = vpop.f32.mrb[0].mxu0
      %2099 = vmatprep.mubr.f32.mxu0 0.0
      %2100 = vmatmul.mubr.f32.gmra.mrb[0].mxu0 %v1934
      %v2101 = vpop.f32.mrb[0].mxu0
      %v2102 = vadd.f32 0.0, %v2101
      %v2103 = vpop.f32.mrb[0].mxu0
      %2104 = vmatprep.mubr.f32.mxu0 0.0
      %2105 = vmatmul.mubr.f32.gmra.mrb[0].mxu0 %v1937
      %v2106 = vpop.f32.mrb[0].mxu0
      %v2107 = vadd.f32 0.0, %v2106
      %v2108 = vpop.f32.mrb[0].mxu0
      %2109 = vmatprep.mubr.f32.mxu0 0.0
      %2110 = vmatmul.mubr.f32.gmra.mrb[0].mxu0 %v1940
      %v2111 = vpop.f32.mrb[0].mxu0
      %v2112 = vadd.f32 0.0, %v2111
      %v2113 = vpop.f32.mrb[0].mxu0
      %2114 = vmatprep.mubr.f32.mxu0 0.0
      %2115 = vmatmul.mubr.f32.gmra.mrb[0].mxu0 %v1943
      %v2116 = vpop.f32.mrb[0].mxu0
      %v2117 = vadd.f32 0.0, %v2116
      %v2118 = vpop.f32.mrb[0].mxu0
      %2119 = vmatprep.mubr.f32.mxu0 0.0
      %2120 = vmatmul.mubr.f32.gmra.mrb[0].mxu0 %v1946
      %v2121 = vpop.f32.mrb[0].mxu0
      %v2122 = vadd.f32 0.0, %v2121
      %v2123 = vpop.f32.mrb[0].mxu0
      %2124 = vmatprep.mubr.f32.mxu0 0.0
      %2125 = vmatmul.mubr.f32.gmra.mrb[0].mxu0 %v1949
      %v2126 = vpop.f32.mrb[0].mxu0
      %v2127 = vadd.f32 0.0, %v2126
      %v2128 = vpop.f32.mrb[0].mxu0
      %2129 = vmatprep.mubr.f32.mxu0 0.0
      %2130 = vmatmul.mubr.f32.gmra.mrb[0].mxu0 %v1952
      %v2131 = vpop.f32.mrb[0].mxu0
      %v2132 = vadd.f32 0.0, %v2131
      %v2133 = vpop.f32.mrb[0].mxu0
      %2134 = vmatprep.mubr.f32.mxu0 0.0
      %2135 = vmatmul.mubr.f32.gmra.mrb[0].mxu0 %v1955
      %v2136 = vpop.f32.mrb[0].mxu0
      %v2137 = vadd.f32 0.0, %v2136
      %v2138 = vpop.f32.mrb[0].mxu0
      %2139 = vmatprep.mubr.f32.mxu0 0.0
      %2140 = vmatmul.mubr.f32.gmra.mrb[0].mxu0 %v1958
      %v2141 = vpop.f32.mrb[0].mxu0
      %v2142 = vadd.f32 0.0, %v2141
      %v2143 = vpop.f32.mrb[0].mxu0
      %2144 = vmatprep.mubr.f32.mxu0 0.0
      %2145 = vmatmul.mubr.f32.gmra.mrb[0].mxu0 %v1961
      %v2146 = vpop.f32.mrb[0].mxu0
      %v2147 = vadd.f32 0.0, %v2146
      %v2148 = vpop.f32.mrb[0].mxu0
      %2149 = vmatprep.mubr.f32.mxu0 0.0
      %2150 = vmatmul.mubr.f32.gmra.mrb[0].mxu0 %v1964
      %v2151 = vpop.f32.mrb[0].mxu0
      %v2152 = vadd.f32 0.0, %v2151
      %v2153 = vpop.f32.mrb[0].mxu0
      %2154 = vmatprep.mubr.f32.mxu0 0.0
      %2155 = vmatmul.mubr.f32.gmra.mrb[0].mxu0 %v1967
      %v2156 = vpop.f32.mrb[0].mxu0
      %v2157 = vadd.f32 0.0, %v2156
      %v2158 = vpop.f32.mrb[0].mxu0
      %2159 = vmatprep.mubr.f32.mxu0 0.0
      %2160 = vmatmul.mubr.f32.gmra.mrb[0].mxu0 %v1970
      %v2161 = vpop.f32.mrb[0].mxu0
      %v2162 = vadd.f32 0.0, %v2161
      %v2163 = vpop.f32.mrb[0].mxu0
      %2164 = vmatprep.mubr.f32.mxu0 0.0
      %2165 = vmatmul.mubr.f32.gmra.mrb[0].mxu0 %v1973
      %v2166 = vpop.f32.mrb[0].mxu0
      %v2167 = vadd.f32 0.0, %v2166
      %v2168 = vpop.f32.mrb[0].mxu0
      %2169 = vmatprep.mubr.f32.mxu0 0.0
      %2170 = vmatmul.mubr.f32.gmra.mrb[0].mxu0 %v1976
      %v2171 = vpop.f32.mrb[0].mxu0
      %v2172 = vadd.f32 0.0, %v2171
      %v2173 = vpop.f32.mrb[0].mxu0
      %2174 = vmatprep.mubr.f32.mxu0 0.0
      %2175 = vmatmul.mubr.f32.gmra.mrb[0].mxu0 %v1979
      %v2176 = vpop.f32.mrb[0].mxu0
      %v2177 = vadd.f32 0.0, %v2176
      %v2178 = vpop.f32.mrb[0].mxu0
      %2179 = vmatprep.mubr.f32.mxu0 0.0
      %2180 = vmatmul.mubr.f32.gmra.mrb[0].mxu0 %v1982
      %v2181 = vpop.f32.mrb[0].mxu0
      %v2182 = vadd.f32 0.0, %v2181
      %v2183 = vpop.f32.mrb[0].mxu0
      %2184 = vmatprep.mubr.f32.mxu0 0.0
      %2185 = vmatmul.mubr.f32.gmra.mrb[0].mxu0 %v1985
      %v2186 = vpop.f32.mrb[0].mxu0
      %v2187 = vadd.f32 0.0, %v2186
      %v2188 = vpop.f32.mrb[0].mxu0
      %2189 = vmatprep.mubr.f32.mxu0 0.0
      %2190 = vmatmul.mubr.f32.gmra.mrb[0].mxu0 %v1988
      %v2191 = vpop.f32.mrb[0].mxu0
      %v2192 = vadd.f32 0.0, %v2191
      %v2193 = vpop.f32.mrb[0].mxu0
      %2194 = vmatprep.mubr.f32.mxu0 0.0
      %2195 = vmatmul.mubr.f32.gmra.mrb[0].mxu0 %v1991
      %v2196 = vpop.f32.mrb[0].mxu0
      %v2197 = vadd.f32 0.0, %v2196
      %v2198 = vpop.f32.mrb[0].mxu0
      %2199 = vmatprep.mubr.f32.mxu0 0.0
      %2200 = vmatmul.mubr.f32.gmra.mrb[0].mxu0 %v1994
      %v2201 = vpop.f32.mrb[0].mxu0
      %v2202 = vadd.f32 0.0, %v2201
      %v2203 = vpop.f32.mrb[0].mxu0
      %2204 = vmatprep.mubr.f32.mxu0 0.0
      %2205 = vmatmul.mubr.f32.gmra.mrb[0].mxu0 %v1997
      %v2206 = vpop.f32.mrb[0].mxu0
      %v2207 = vadd.f32 0.0, %v2206
      %v2208 = vpop.f32.mrb[0].mxu0
      %2209 = vmatprep.mubr.f32.mxu0 0.0
      %2210 = vmatmul.mubr.f32.gmra.mrb[0].mxu0 %v2000
      %v2211 = vpop.f32.mrb[0].mxu0
      %v2212 = vadd.f32 0.0, %v2211
      %v2213 = vpop.f32.mrb[0].mxu0
      %2214 = vmatprep.mubr.f32.mxu0 0.0
      %2215 = vmatmul.mubr.f32.gmra.mrb[0].mxu0 %v2003
      %v2216 = vpop.f32.mrb[0].mxu0
      %v2217 = vadd.f32 0.0, %v2216
      %v2218 = vpop.f32.mrb[0].mxu0
      %2219 = vmatprep.mubr.f32.mxu0 0.0
      %2220 = vmatmul.mubr.f32.gmra.mrb[0].mxu0 %v2006
      %v2221 = vpop.f32.mrb[0].mxu0
      %v2222 = vadd.f32 0.0, %v2221
      %v2223 = vpop.f32.mrb[0].mxu0
      %2224 = vmatprep.mubr.f32.mxu0 0.0
      %2225 = vmatmul.mubr.f32.gmra.mrb[0].mxu0 %v2009
      %v2226 = vpop.f32.mrb[0].mxu0
      %v2227 = vadd.f32 0.0, %v2226
      %v2228 = vpop.f32.mrb[0].mxu0
      %2229 = vmatprep.mubr.f32.mxu0 0.0
      %2230 = vmatmul.mubr.f32.gmra.mrb[0].mxu0 %v2012
      %v2231 = vpop.f32.mrb[0].mxu0
      %v2232 = vadd.f32 0.0, %v2231
      %v2233 = vpop.f32.mrb[0].mxu0
      %2234 = vmatprep.mubr.f32.mxu0 0.0
      %2235 = vmatmul.mubr.f32.gmra.mrb[0].mxu0 %v2015
      %v2236 = vpop.f32.mrb[0].mxu0
      %v2237 = vadd.f32 0.0, %v2236
      %v2238 = vpop.f32.mrb[0].mxu0
      %2239 = vmatprep.mubr.f32.mxu0 0.0
      %2240 = vmatmul.mubr.f32.gmra.mrb[0].mxu0 %v2018
      %v2241 = vpop.f32.mrb[0].mxu0
      %v2242 = vadd.f32 0.0, %v2241
      %v2243 = vpop.f32.mrb[0].mxu0
      %2244 = vmatprep.mubr.f32.mxu0 0.0
      %2245 = vmatmul.mubr.f32.gmra.mrb[0].mxu0 %v2021
      %v2246 = vpop.f32.mrb[0].mxu0
      %v2247 = vadd.f32 0.0, %v2246
      %v2248 = vpop.f32.mrb[0].mxu0
      %2249 = vmatprep.mubr.f32.mxu0 0.0
      %2250 = vmatmul.mubr.f32.gmra.mrb[0].mxu0 %v2024
      %v2251 = vpop.f32.mrb[0].mxu0
      %v2252 = vadd.f32 0.0, %v2251
      %v2253 = vpop.f32.mrb[0].mxu0
      %2254 = vdwg.mxu0
      %vm2255 = vcmask 15360
      %2256 = vst.msk [vmem:[%s385] sm:$0xff] %vm2255, %v2097
      %2257 = vst.msk [vmem:[%s385 + $0x8] sm:$0xff] %vm2255, %v2102
      %2258 = vst.msk [vmem:[%s385 + $0x10] sm:$0xff] %vm2255, %v2107
      %2259 = vst.msk [vmem:[%s385 + $0x18] sm:$0xff] %vm2255, %v2112
      %2260 = vst.msk [vmem:[%s385 + $0x20] sm:$0xff] %vm2255, %v2117
      %2261 = vst.msk [vmem:[%s385 + $0x28] sm:$0xff] %vm2255, %v2122
      %2262 = vst.msk [vmem:[%s385 + $0x30] sm:$0xff] %vm2255, %v2127
      %2263 = vst.msk [vmem:[%s385 + $0x38] sm:$0xff] %vm2255, %v2132
      %2264 = vst.msk [vmem:[%s385 + $0x40] sm:$0xff] %vm2255, %v2137
      %2265 = vst.msk [vmem:[%s385 + $0x48] sm:$0xff] %vm2255, %v2142
      %2266 = vst.msk [vmem:[%s385 + $0x50] sm:$0xff] %vm2255, %v2147
      %2267 = vst.msk [vmem:[%s385 + $0x58] sm:$0xff] %vm2255, %v2152
      %2268 = vst.msk [vmem:[%s385 + $0x60] sm:$0xff] %vm2255, %v2157
      %2269 = vst.msk [vmem:[%s385 + $0x68] sm:$0xff] %vm2255, %v2162
      %2270 = vst.msk [vmem:[%s385 + $0x70] sm:$0xff] %vm2255, %v2167
      %2271 = vst.msk [vmem:[%s385 + $0x78] sm:$0xff] %vm2255, %v2172
      %2272 = vst.msk [vmem:[%s385 + $0x80] sm:$0xff] %vm2255, %v2177
      %2273 = vst.msk [vmem:[%s385 + $0x88] sm:$0xff] %vm2255, %v2182
      %2274 = vst.msk [vmem:[%s385 + $0x90] sm:$0xff] %vm2255, %v2187
      %2275 = vst.msk [vmem:[%s385 + $0x98] sm:$0xff] %vm2255, %v2192
      %2276 = vst.msk [vmem:[%s385 + $0xa0] sm:$0xff] %vm2255, %v2197
      %2277 = vst.msk [vmem:[%s385 + $0xa8] sm:$0xff] %vm2255, %v2202
      %2278 = vst.msk [vmem:[%s385 + $0xb0] sm:$0xff] %vm2255, %v2207
      %2279 = vst.msk [vmem:[%s385 + $0xb8] sm:$0xff] %vm2255, %v2212
      %2280 = vst.msk [vmem:[%s385 + $0xc0] sm:$0xff] %vm2255, %v2217
      %2281 = vst.msk [vmem:[%s385 + $0xc8] sm:$0xff] %vm2255, %v2222
      %2282 = vst.msk [vmem:[%s385 + $0xd0] sm:$0xff] %vm2255, %v2227
      %2283 = vst.msk [vmem:[%s385 + $0xd8] sm:$0xff] %vm2255, %v2232
      %2284 = vst.msk [vmem:[%s385 + $0xe0] sm:$0xff] %vm2255, %v2237
      %2285 = vst.msk [vmem:[%s385 + $0xe8] sm:$0xff] %vm2255, %v2242
      %2286 = vst.msk [vmem:[%s385 + $0xf0] sm:$0xff] %vm2255, %v2247
      %2287 = vst.msk [vmem:[%s385 + $0xf8] sm:$0xff] %vm2255, %v2252
      %s2288 = smul.u32 16, %s20
      %p2289 = scmp.lt.s32.totalorder %s19, 1
      %s2290 = scalar_select %p2289, %s19, 1
      %p2291 = scmp.lt.s32.totalorder %s2288, 15
      %s2292 = scalar_select %p2291, %s2288, 15
      %s2293 = smul.addr %s2292, 2
      %s2294 = smul.addr %s2290, 32
      %s2295 = sadd.s32 %s2293, %s2294
      %s2296 = smul.addr %s2295, 8
      %s2297 = scalar_lea.vmem %s4, %s2296
      // Predicated region
      $region37: #{tpu_custom_call.1} parent=35 // pred_check
        %p2298 = pneg %p174
      $region38: #{tpu_custom_call.1} parent=35 // pred_check_branch
        %2300 = sbr.rel (%p2298) target = $region40
      $region39: #{tpu_custom_call.1} parent=35 // pred_region
        %s2301 = smul.u32 16, %s20
      $region40: #{tpu_custom_call.1} parent=35 // pred_fallthru
        _
    $region36: #{tpu_custom_call.1} parent=5 // pred_fallthru
      _
    %p2302 = scmp.le.s32.totalorder 2, %s10
    // Predicated region
    $region41: #{tpu_custom_call.1} parent=5 // pred_check
      %p2303 = pneg %p2302
    $region42: #{tpu_custom_call.1} parent=5 // pred_check_branch
      %2305 = sbr.rel (%p2303) target = $region44
    $region43: #{tpu_custom_call.1} parent=5 // pred_region
      %s2306 = ssub.s32 %s10, 2
      // Predicated region
      $region45: #{tpu_custom_call.1} parent=43 // pred_check
        %p2307 = pneg %p180
      $region46: #{tpu_custom_call.1} parent=43 // pred_check_branch
        %2309 = sbr.rel (%p2307) target = $region48
      $region47: #{tpu_custom_call.1} parent=43 // pred_region
        %s2310 = smul.u32 16, %s22
        %p2311 = scmp.lt.s32.totalorder %s21, 1
        %s2312 = scalar_select %p2311, %s21, 1
        %p2313 = scmp.lt.s32.totalorder %s2310, 15
        %s2314 = scalar_select %p2313, %s2310, 15
        %s2315 = smul.addr %s2314, 2
        %s2316 = smul.addr %s2312, 32
        %s2317 = sadd.s32 %s2315, %s2316
        %s2318 = smul.addr %s2317, 8
        %s2319 = scalar_lea.vmem %s4, %s2318
      $region48: #{tpu_custom_call.1} parent=43 // pred_fallthru
        _
    $region44: #{tpu_custom_call.1} parent=5 // pred_fallthru
      _
  $region6: #{tpu_custom_call.1} parent=0 // loop_footer
    %s14 = sadd.s32 1, %s10
  $region7: #{tpu_custom_call.1} parent=0 // loop_footer_branch
    %9 = sbr.rel target = $region3
  $region8: #{tpu_custom_call.1} parent=0 // loop_exit
    _

</llo_original>
